<compile_context>
chip_gen: v7x
topology: tpu7x:2x2x1
jax: 0.10.0
libtpu: 0.0.40
codegen_flags: <defaults>
</compile_context>

<pallas_src>
import functools
import math

import jax
import jax.numpy as jnp
from jax import lax
from jax.experimental import pallas as pl
from jax.experimental.pallas import tpu as pltpu

DROPOUT_P = 0.3

# murmur3 fmix32 multiply constants as wrapped int32 literals (portable int32-only hash,
# used only on the fallback path when the hardware PRNG is unavailable).
_FMIX_C1 = -2048144789   # 0x85EBCA6B as int32
_FMIX_C2 = -1028477379   # 0xC2B2AE35 as int32


def _srl32(x, n):
    """Logical right shift on int32: arithmetic shift then mask sign-extension."""
    return (x >> n) & jnp.int32((1 << (32 - n)) - 1)


def _fmix32(x):
    """Counter-based int32 bit mixer (murmur3 finalizer)."""
    x = x ^ _srl32(x, 16)
    x = x * jnp.int32(_FMIX_C1)
    x = x ^ _srl32(x, 13)
    x = x * jnp.int32(_FMIX_C2)
    x = x ^ _srl32(x, 16)
    return x


def sdpa_dropout_kernel(seed_ref, q_ref, k_ref, v_ref, o_ref, *,
                        dropout_p, use_hw_prng):
    # q_ref: (HB, Lq, D)   k_ref / v_ref: (HB, Lk, D)   o_ref: (HB, Lq, D)
    hb, lq, d = q_ref.shape
    lk = k_ref.shape[1]

    # Fold the (as-written) sqrt(d_k) scale into q once: Lq*D mults, not Lq*Lk.
    # sqrt(64) = 8 is a power of two -> exact even in bf16.
    scale = jnp.asarray(math.sqrt(d), dtype=q_ref.dtype)
    q = q_ref[...] * scale

    # scores[h, i, j] = sum_d q[h, i, d] * k[h, j, d]   (no explicit transpose)
    # bf16 MXU operands, f32 accumulation.
    s = lax.dot_general(q, k_ref[...], (((2,), (2,)), ((0,), (0,))),
                        preferred_element_type=jnp.float32)

    # Numerically stable softmax in f32; reciprocal runs on the EUP slot.
    m = jnp.max(s, axis=-1, keepdims=True)
    e = jnp.exp(s - m)
    denom = jnp.sum(e, axis=-1, keepdims=True)
    inv_denom = pl.reciprocal(denom, approx=True)

    if dropout_p > 0.0:
        if use_hw_prng:
            # Hardware PRNG: per-grid-step stream so blocks are decorrelated.
            pltpu.prng_seed(seed_ref[0], pl.program_id(0))
            bits = pltpu.prng_random_bits((hb, lq, lk))
        else:
            # TODO(synk): portable fallback only; not bit-exact with the HW stream.
            head0 = pl.program_id(0) * hb
            h_idx = lax.broadcasted_iota(jnp.int32, (hb, lq, lk), 0) + head0
            r_idx = lax.broadcasted_iota(jnp.int32, (hb, lq, lk), 1)
            c_idx = lax.broadcasted_iota(jnp.int32, (hb, lq, lk), 2)
            flat = (h_idx * lq + r_idx) * lk + c_idx       # globally unique (int32)
            bits = _fmix32(flat ^ seed_ref[0])

        # Integer-domain threshold on 24 uniform bits: keep prob = 1 - dropout_p.
        mask24 = jnp.asarray(0x00FFFFFF, dtype=bits.dtype)
        thresh = jnp.asarray(int(round(dropout_p * (1 << 24))), dtype=bits.dtype)
        keep = (bits & mask24) >= thresh

        # Fuse softmax normalization + dropout keep-scaling into one pass.
        keep_scale = jnp.float32(1.0 / (1.0 - dropout_p))
        p = jnp.where(keep, e * (inv_denom * keep_scale), jnp.float32(0.0))
    else:
        p = e * inv_denom

    # Single downcast to the matmul input dtype, then output = dropout_qk @ v.
    p = p.astype(v_ref.dtype)
    out = lax.dot_general(p, v_ref[...], (((2,), (1,)), ((0,), (0,))),
                          preferred_element_type=jnp.float32)
    o_ref[...] = out.astype(o_ref.dtype)


def _vmem_capacity_bytes():
    """Per-core physical VMEM (v5e/v6e: 128 MiB, v7x: 64 MiB); conservative fallback."""
    try:
        cap = int(pltpu.get_tpu_info().vmem_capacity_bytes)
        if cap > 0:
            return cap
    except Exception:
        pass
    return 64 * 1024 * 1024


def _pick_head_tile(bh, lq, lk, d, in_itemsize, out_itemsize, vmem_budget_bytes):
    """Largest divisor of B*H whose (double-buffered) working set fits the budget."""
    best = 1
    for hb in range(1, bh + 1):
        if bh % hb:
            continue
        # double-buffered q,k,v input blocks + o output block
        io_bytes = 2 * hb * ((lq + 2 * lk) * d * in_itemsize + lq * d * out_itemsize)
        # f32/i32 temporaries over the (hb, lq, lk) score block
        # (s, e, p, random bits, keep mask + headroom)
        tmp_bytes = 6 * hb * lq * lk * 4
        if io_bytes + tmp_bytes <= vmem_budget_bytes:
            best = hb
    return best


def sdpa_dropout(query, key, value, *, seed=0, dropout_p=DROPOUT_P,
                 compute_dtype=jnp.bfloat16, use_hw_prng=True):
    """query: [B,H,Lq,D], key/value: [B,H,Lk,D] -> [B,H,Lq,D] in query.dtype."""
    B, H, Lq, D = query.shape
    _, _, Lk, _ = key.shape
    BH = B * H

    # bf16 MXU operands (f32 accumulation in-kernel): ~3x MXU throughput and half the
    # DMA bytes / VMEM block footprint on v5e/v6e/v7x.
    qf = query.reshape(BH, Lq, D).astype(compute_dtype)
    kf = key.reshape(BH, Lk, D).astype(compute_dtype)
    vf = value.reshape(BH, Lk, D).astype(compute_dtype)
    seed_arr = jnp.asarray([seed], dtype=jnp.int32)

    out_dtype = query.dtype
    vmem_cap = _vmem_capacity_bytes()
    vmem_limit = int(vmem_cap * 0.7)          # leave headroom for double buffering
    hb = _pick_head_tile(BH, Lq, Lk, D,
                         jnp.dtype(compute_dtype).itemsize,
                         jnp.dtype(out_dtype).itemsize,
                         vmem_budget_bytes=vmem_limit // 3)
    # Ensure >= 2 grid steps so the "parallel" head axis can shard across the two
    # TensorCores on v7x; on single-TC v5e/v6e the extra step costs ~0.35us only.
    if BH >= 2:
        hb = min(hb, BH // 2)
        while BH % hb:
            hb -= 1
    hb = max(hb, 1)
    grid = (BH // hb,)

    # TODO(synk): D=64 fills only half a vreg lane-wise and the output store is a masked
    # vst; packing 2 heads into the last axis (2*D = 128) would fix lane density but needs
    # a wrapper transpose + in-kernel head split -- not worth it at these shapes.
    # TODO(synk): for long sequences, tile Lk with an online-softmax (flash) accumulator
    # sized against the per-core VMEM instead of materializing the full (Lq, Lk) scores.

    def build(hw_prng):
        kernel = functools.partial(sdpa_dropout_kernel,
                                   dropout_p=float(dropout_p),
                                   use_hw_prng=hw_prng)
        grid_spec = pltpu.PrefetchScalarGridSpec(
            num_scalar_prefetch=1,
            grid=grid,
            in_specs=[
                pl.BlockSpec((hb, Lq, D), lambda i, s: (i, 0, 0)),
                pl.BlockSpec((hb, Lk, D), lambda i, s: (i, 0, 0)),
                pl.BlockSpec((hb, Lk, D), lambda i, s: (i, 0, 0)),
            ],
            out_specs=pl.BlockSpec((hb, Lq, D), lambda i, s: (i, 0, 0)),
        )
        cost = pl.CostEstimate(
            flops=4 * BH * Lq * Lk * D,                      # two matmuls
            transcendentals=BH * Lq * Lk,                    # exp
            bytes_accessed=((qf.size + kf.size + vf.size) * qf.dtype.itemsize
                            + BH * Lq * D * jnp.dtype(out_dtype).itemsize),
        )
        return pl.pallas_call(
            kernel,
            out_shape=jax.ShapeDtypeStruct((BH, Lq, D), out_dtype),
            grid_spec=grid_spec,
            compiler_params=pltpu.CompilerParams(
                # no cross-step accumulator -> safe to shard across TensorCores (v7x)
                dimension_semantics=("parallel",),
                vmem_limit_bytes=vmem_limit,
            ),
            cost_estimate=cost,
        )

    try:
        out = build(use_hw_prng)(seed_arr, qf, kf, vf)
    except Exception:
        if not use_hw_prng:
            raise
        # TODO(synk): HW PRNG has no lowering in some environments (e.g. interpret mode);
        # fall back to the portable counter-hash mask (same keep rate, different stream).
        out = build(False)(seed_arr, qf, kf, vf)

    return out.reshape(B, H, Lq, D)


if __name__ == "__main__":
    # Small shapes consistent with the module's 4-D SDPA forward: query (1, 8, 16, 64);
    # key/value use a matching head count so the matmuls are well-defined: (1, 8, 64, 64).
    B, H, Lq, Lk, D = 1, 8, 16, 64, 64

    k0, k1, k2 = jax.random.split(jax.random.PRNGKey(0), 3)
    query = jax.random.normal(k0, (B, H, Lq, D), dtype=jnp.float32)
    key = jax.random.normal(k1, (B, H, Lk, D), dtype=jnp.float32)
    value = jax.random.normal(k2, (B, H, Lk, D), dtype=jnp.float32)

    # Sanity check with dropout disabled against a precision-matched pure-JAX reference
    # (bf16 matmul operands, f32 accumulation -- same as the kernel).
    qb = query.astype(jnp.bfloat16) * jnp.asarray(math.sqrt(D), jnp.bfloat16)
    kb = key.astype(jnp.bfloat16)
    vb = value.astype(jnp.bfloat16)
    s_ref = jnp.einsum("bhqd,bhkd->bhqk", qb, kb, preferred_element_type=jnp.float32)
    p_ref = jax.nn.softmax(s_ref, axis=-1).astype(jnp.bfloat16)
    ref = jnp.einsum("bhqk,bhkd->bhqd", p_ref, vb, preferred_element_type=jnp.float32)

    got_nodrop = sdpa_dropout(query, key, value, seed=0, dropout_p=0.0)
    assert jnp.allclose(got_nodrop, ref, rtol=3e-2, atol=3e-2), \
        "dropout_p=0 output does not match reference"

    # Main run with the module's dropout p=0.3.
    out = sdpa_dropout(query, key, value, seed=0, dropout_p=DROPOUT_P)
    jax.block_until_ready(out)

    assert out.shape == (B, H, Lq, D)
    assert out.dtype == query.dtype
    assert bool(jnp.all(jnp.isfinite(out)))
    print("KERNEL_OK")
</pallas_src>

<mosaic_0001>
module attributes {stable_mosaic.version = 11 : i64} {
  func.func @sdpa_dropout_kernel(%arg0: i32, %arg1: memref<1xi32, #tpu.memory_space<smem>>, %arg2: memref<4x16x64xbf16, #tpu.memory_space<vmem>>, %arg3: memref<4x64x64xbf16, #tpu.memory_space<vmem>>, %arg4: memref<4x64x64xbf16, #tpu.memory_space<vmem>>, %arg5: memref<4x16x64xf32, #tpu.memory_space<vmem>>) attributes {dimension_semantics = [#tpu.dimension_semantics<parallel>], iteration_bounds = array<i64: 2>, scalar_prefetch = 1 : i64, scratch_operands = 0 : i64, tpu.core_type = #tpu.core_type<tc>, window_params = [{transform_indices = @transform_0, window_bounds = array<i64: 4, 16, 64>}, {transform_indices = @transform_1, window_bounds = array<i64: 4, 64, 64>}, {transform_indices = @transform_2, window_bounds = array<i64: 4, 64, 64>}, {transform_indices = @transform_3, window_bounds = array<i64: 4, 16, 64>}]} {
    %c0 = arith.constant 0 : index
    %c0_0 = arith.constant 0 : index
    %c0_1 = arith.constant 0 : index
    %0 = vector.load %arg2[%c0, %c0_0, %c0_1] : memref<4x16x64xbf16, #tpu.memory_space<vmem>>, vector<4x16x64xbf16>
    %cst = arith.constant 8.000000e+00 : bf16
    %1 = vector.broadcast %cst : bf16 to vector<4x16x64xbf16>
    %2 = arith.mulf %0, %1 : vector<4x16x64xbf16>
    %c0_2 = arith.constant 0 : index
    %c0_3 = arith.constant 0 : index
    %c0_4 = arith.constant 0 : index
    %3 = vector.load %arg3[%c0_2, %c0_3, %c0_4] : memref<4x64x64xbf16, #tpu.memory_space<vmem>>, vector<4x64x64xbf16>
    %cst_5 = arith.constant dense<0.000000e+00> : vector<4x16x64xf32>
    %4 = tpu.matmul %2, %3, %cst_5 {dimension_numbers = #tpu.dot_dimension_numbers<[2], [2], [1], [1], [0, 0, 0, 1, 1, 1], [0], [0]>} : vector<4x16x64xbf16>, vector<4x64x64xbf16>, vector<4x16x64xf32> -> vector<4x16x64xf32>
    %cst_6 = arith.constant dense<0xFF800000> : vector<4x16xf32>
    %5 = vector.multi_reduction <maximumf>, %4, %cst_6 [2] : vector<4x16x64xf32> to vector<4x16xf32>
    %6 = vector.shape_cast %5 : vector<4x16xf32> to vector<4x16x1xf32>
    %7 = vector.broadcast %6 : vector<4x16x1xf32> to vector<4x16x64xf32>
    %8 = arith.subf %4, %7 : vector<4x16x64xf32>
    %9 = math.exp %8 : vector<4x16x64xf32>
    %cst_7 = arith.constant dense<0.000000e+00> : vector<4x16xf32>
    %10 = vector.multi_reduction <add>, %9, %cst_7 [2] : vector<4x16x64xf32> to vector<4x16xf32>
    %11 = vector.shape_cast %10 : vector<4x16xf32> to vector<4x16x1xf32>
    %12 = tpu.reciprocal %11 {approx = true} : vector<4x16x1xf32> -> vector<4x16x1xf32>
    %13 = vector.broadcast %12 : vector<4x16x1xf32> to vector<4x16x64xf32>
    %14 = arith.mulf %9, %13 : vector<4x16x64xf32>
    %15 = arith.truncf %14 : vector<4x16x64xf32> to vector<4x16x64xbf16>
    %c0_8 = arith.constant 0 : index
    %c0_9 = arith.constant 0 : index
    %c0_10 = arith.constant 0 : index
    %16 = vector.load %arg4[%c0_8, %c0_9, %c0_10] : memref<4x64x64xbf16, #tpu.memory_space<vmem>>, vector<4x64x64xbf16>
    %cst_11 = arith.constant dense<0.000000e+00> : vector<4x16x64xf32>
    %17 = tpu.matmul %15, %16, %cst_11 {dimension_numbers = #tpu.dot_dimension_numbers<[2], [1], [1], [2], [0, 0, 0, 1, 1, 2], [0], [0]>} : vector<4x16x64xbf16>, vector<4x64x64xbf16>, vector<4x16x64xf32> -> vector<4x16x64xf32>
    %c0_12 = arith.constant 0 : index
    %c0_13 = arith.constant 0 : index
    %c0_14 = arith.constant 0 : index
    %18 = vector.load %arg5[%c0_12, %c0_13, %c0_14] : memref<4x16x64xf32, #tpu.memory_space<vmem>>, vector<4x16x64xf32>
    tpu.vector_store %arg5[%c0_12, %c0_13, %c0_14], %17 {strides = array<i32>} : memref<4x16x64xf32, #tpu.memory_space<vmem>>, vector<4x16x64xf32>,
    return
  }
  func.func @transform_0(%arg0: i32, %arg1: memref<1xi32, #tpu.memory_space<smem>>) -> (i32, i32, i32) {
    %c0_i32 = arith.constant 0 : i32
    %c0_i32_0 = arith.constant 0 : i32
    %c0_i32_1 = arith.constant 0 : i32
    return %arg0, %c0_i32, %c0_i32_0 : i32, i32, i32
  }
  func.func @transform_1(%arg0: i32, %arg1: memref<1xi32, #tpu.memory_space<smem>>) -> (i32, i32, i32) {
    %c0_i32 = arith.constant 0 : i32
    %c0_i32_0 = arith.constant 0 : i32
    %c0_i32_1 = arith.constant 0 : i32
    return %arg0, %c0_i32, %c0_i32_0 : i32, i32, i32
  }
  func.func @transform_2(%arg0: i32, %arg1: memref<1xi32, #tpu.memory_space<smem>>) -> (i32, i32, i32) {
    %c0_i32 = arith.constant 0 : i32
    %c0_i32_0 = arith.constant 0 : i32
    %c0_i32_1 = arith.constant 0 : i32
    return %arg0, %c0_i32, %c0_i32_0 : i32, i32, i32
  }
  func.func @transform_3(%arg0: i32, %arg1: memref<1xi32, #tpu.memory_space<smem>>) -> (i32, i32, i32) {
    %c0_i32 = arith.constant 0 : i32
    %c0_i32_0 = arith.constant 0 : i32
    %c0_i32_1 = arith.constant 0 : i32
    return %arg0, %c0_i32, %c0_i32_0 : i32, i32, i32
  }
}

module attributes {stable_mosaic.version = 11 : i64} {
  func.func @sdpa_dropout_kernel(%arg0: i32, %arg1: memref<1xi32, #tpu.memory_space<smem>>, %arg2: memref<4x16x64xbf16, #tpu.memory_space<vmem>>, %arg3: memref<4x64x64xbf16, #tpu.memory_space<vmem>>, %arg4: memref<4x64x64xbf16, #tpu.memory_space<vmem>>, %arg5: memref<4x16x64xf32, #tpu.memory_space<vmem>>) attributes {dimension_semantics = [#tpu.dimension_semantics<parallel>], iteration_bounds = array<i64: 2>, scalar_prefetch = 1 : i64, scratch_operands = 0 : i64, tpu.core_type = #tpu.core_type<tc>, window_params = [{transform_indices = @transform_0, window_bounds = array<i64: 4, 16, 64>}, {transform_indices = @transform_1, window_bounds = array<i64: 4, 64, 64>}, {transform_indices = @transform_2, window_bounds = array<i64: 4, 64, 64>}, {transform_indices = @transform_3, window_bounds = array<i64: 4, 16, 64>}]} {
    %c0 = arith.constant 0 : index
    %c0_0 = arith.constant 0 : index
    %c0_1 = arith.constant 0 : index
    %0 = vector.load %arg2[%c0, %c0_0, %c0_1] : memref<4x16x64xbf16, #tpu.memory_space<vmem>>, vector<4x16x64xbf16>
    %cst = arith.constant 8.000000e+00 : bf16
    %1 = vector.broadcast %cst : bf16 to vector<4x16x64xbf16>
    %2 = arith.mulf %0, %1 : vector<4x16x64xbf16>
    %c0_2 = arith.constant 0 : index
    %c0_3 = arith.constant 0 : index
    %c0_4 = arith.constant 0 : index
    %3 = vector.load %arg3[%c0_2, %c0_3, %c0_4] : memref<4x64x64xbf16, #tpu.memory_space<vmem>>, vector<4x64x64xbf16>
    %cst_5 = arith.constant dense<0.000000e+00> : vector<4x16x64xf32>
    %4 = tpu.matmul %2, %3, %cst_5 {dimension_numbers = #tpu.dot_dimension_numbers<[2], [2], [1], [1], [0, 0, 0, 1, 1, 1], [0], [0]>} : vector<4x16x64xbf16>, vector<4x64x64xbf16>, vector<4x16x64xf32> -> vector<4x16x64xf32>
    %cst_6 = arith.constant dense<0xFF800000> : vector<4x16xf32>
    %5 = vector.multi_reduction <maximumf>, %4, %cst_6 [2] : vector<4x16x64xf32> to vector<4x16xf32>
    %6 = vector.shape_cast %5 : vector<4x16xf32> to vector<4x16x1xf32>
    %7 = vector.broadcast %6 : vector<4x16x1xf32> to vector<4x16x64xf32>
    %8 = arith.subf %4, %7 : vector<4x16x64xf32>
    %9 = math.exp %8 : vector<4x16x64xf32>
    %cst_7 = arith.constant dense<0.000000e+00> : vector<4x16xf32>
    %10 = vector.multi_reduction <add>, %9, %cst_7 [2] : vector<4x16x64xf32> to vector<4x16xf32>
    %11 = vector.shape_cast %10 : vector<4x16xf32> to vector<4x16x1xf32>
    %12 = tpu.reciprocal %11 {approx = true} : vector<4x16x1xf32> -> vector<4x16x1xf32>
    %13 = vector.broadcast %12 : vector<4x16x1xf32> to vector<4x16x64xf32>
    %14 = arith.mulf %9, %13 : vector<4x16x64xf32>
    %15 = arith.truncf %14 : vector<4x16x64xf32> to vector<4x16x64xbf16>
    %c0_8 = arith.constant 0 : index
    %c0_9 = arith.constant 0 : index
    %c0_10 = arith.constant 0 : index
    %16 = vector.load %arg4[%c0_8, %c0_9, %c0_10] : memref<4x64x64xbf16, #tpu.memory_space<vmem>>, vector<4x64x64xbf16>
    %cst_11 = arith.constant dense<0.000000e+00> : vector<4x16x64xf32>
    %17 = tpu.matmul %15, %16, %cst_11 {dimension_numbers = #tpu.dot_dimension_numbers<[2], [1], [1], [2], [0, 0, 0, 1, 1, 2], [0], [0]>} : vector<4x16x64xbf16>, vector<4x64x64xbf16>, vector<4x16x64xf32> -> vector<4x16x64xf32>
    %c0_12 = arith.constant 0 : index
    %c0_13 = arith.constant 0 : index
    %c0_14 = arith.constant 0 : index
    %18 = vector.load %arg5[%c0_12, %c0_13, %c0_14] : memref<4x16x64xf32, #tpu.memory_space<vmem>>, vector<4x16x64xf32>
    tpu.vector_store %arg5[%c0_12, %c0_13, %c0_14], %17 {strides = array<i32>} : memref<4x16x64xf32, #tpu.memory_space<vmem>>, vector<4x16x64xf32>,
    return
  }
  func.func @transform_0(%arg0: i32, %arg1: memref<1xi32, #tpu.memory_space<smem>>) -> (i32, i32, i32) {
    %c0_i32 = arith.constant 0 : i32
    %c0_i32_0 = arith.constant 0 : i32
    %c0_i32_1 = arith.constant 0 : i32
    return %arg0, %c0_i32, %c0_i32_0 : i32, i32, i32
  }
  func.func @transform_1(%arg0: i32, %arg1: memref<1xi32, #tpu.memory_space<smem>>) -> (i32, i32, i32) {
    %c0_i32 = arith.constant 0 : i32
    %c0_i32_0 = arith.constant 0 : i32
    %c0_i32_1 = arith.constant 0 : i32
    return %arg0, %c0_i32, %c0_i32_0 : i32, i32, i32
  }
  func.func @transform_2(%arg0: i32, %arg1: memref<1xi32, #tpu.memory_space<smem>>) -> (i32, i32, i32) {
    %c0_i32 = arith.constant 0 : i32
    %c0_i32_0 = arith.constant 0 : i32
    %c0_i32_1 = arith.constant 0 : i32
    return %arg0, %c0_i32, %c0_i32_0 : i32, i32, i32
  }
  func.func @transform_3(%arg0: i32, %arg1: memref<1xi32, #tpu.memory_space<smem>>) -> (i32, i32, i32) {
    %c0_i32 = arith.constant 0 : i32
    %c0_i32_0 = arith.constant 0 : i32
    %c0_i32_1 = arith.constant 0 : i32
    return %arg0, %c0_i32, %c0_i32_0 : i32, i32, i32
  }
}

</mosaic_0001>

<llo_original>
// kernel: tpu_custom_call.1
$region0: #{tpu_custom_call.1}
  #allocation0 [shape = 'u32[]', space=smem, size = 0x4, offset = 0x4, fixed_abs, tag = 'smem constant byte address 0x4 - core index']
  #allocation1 [shape = 'u32[144,128]{1,0:T(1,128)}', space=vmem, size = 0x12000, scoped, tag = 'internal scratch']
  #allocation2 [shape = 's32[1]{0}', space=sflag, size = 0x4, scoped, tag = 'scoped memory for tpu_custom_call.1']
  #allocation3 [shape = 's32[1]{0:T(128)S(6)}', space=smem, size = 0x200, scoped, tag = 'prefetched SMEM operand 0']
  %s0 = inlined_call_operand.<no memory space> [shape: s32[1], index: 0, kind: input, shape index: {}]
  %s1 = inlined_call_operand.hbm [shape: bf16[8,16,64], index: 1, kind: input, shape index: {}]
  %s2 = inlined_call_operand.hbm [shape: bf16[8,64,64], index: 2, kind: input, shape index: {}]
  %s3 = inlined_call_operand.hbm [shape: bf16[8,64,64], index: 3, kind: input, shape index: {}]
  %s4 = inlined_call_operand.hbm [shape: f32[8,16,64], index: 4, kind: output, shape index: {}]
  %s5 = sld [smem:[#allocation0]]
  $region57: #{tpu_custom_call.1} parent=0
    _
  %s7 = ssub.s32 1, %s5
  %s8 = scalar_select 0, %s7, %s5
  %9 = sst [smem:[#allocation3]] %s0
  $region1: #{tpu_custom_call.1} parent=0
    #allocation4 [shape = 'u8[32768]{0}', space=vmem, size = 0x8000, scoped, tag = 'input window, operand 1']
    #allocation5 [shape = 's32[2]{0}', space=sflag, size = 0x8, scoped, tag = 'scoped memory for tpu_custom_call.1']
    #allocation6 [shape = 's32[2]{0}', space=sflag, size = 0x8, scoped, tag = 'scoped memory for tpu_custom_call.1']
    #allocation7 [shape = 'u8[131072]{0}', space=vmem, size = 0x20000, scoped, tag = 'input window, operand 2']
    #allocation8 [shape = 's32[2]{0}', space=sflag, size = 0x8, scoped, tag = 'scoped memory for tpu_custom_call.1']
    #allocation9 [shape = 'u8[131072]{0}', space=vmem, size = 0x20000, scoped, tag = 'input window, operand 3']
    #allocation10 [shape = 'u8[65536]{0}', space=vmem, size = 0x10000, scoped, tag = 'output window, operand 0']
    %10 = vsyncpa [#allocation5], 0
    %s11 = scalar_lea.sflag [#allocation5], 1
    %12 = vsyncpa %s11, 0
    %13 = vsyncpa [#allocation8], 0
    %s14 = scalar_lea.sflag [#allocation8], 1
    %15 = vsyncpa %s14, 0
    %16 = vsyncpa [#allocation6], 0
    %s17 = scalar_lea.sflag [#allocation6], 1
    %18 = vsyncpa %s17, 0
    loop: start=0, step=1, limit=4
    $region2: #{tpu_custom_call.1} parent=1 // loop_pre_header
      _
    $region3: #{tpu_custom_call.1} parent=1 // loop_header
      %s20 = sphi 0, %s24
      %p21 = scmp.ge.s32.totalorder %s20, 4
      %s30 = sphi 0, %s32
      %s33 = sphi 0, %s30
      %s34 = sphi 0, %s33
      %s50 = sphi 0, %s34
      %s56 = sphi 0, %s58
      %s59 = sphi 0, %s56
      %s60 = sphi 0, %s59
      %s76 = sphi 0, %s60
      %s82 = sphi 0, %s84
      %s85 = sphi 0, %s82
      %s86 = sphi 0, %s85
      %s102 = sphi 0, %s86
      %s108 = sphi 0, %s110
      %s111 = sphi 0, %s108
      %s112 = sphi 0, %s111
      %s128 = sphi 0, %s112
    $region4: #{tpu_custom_call.1} parent=1 // loop_header_branch
      %23 = sbr.rel (%p21) target = $region8
    $region5: #{tpu_custom_call.1} parent=1 // loop_body
      %s25 = ssub.s32 %s20, 1
      %s26 = ssub.s32 %s20, 2
      %s27 = sadd.s32 %s20, 1
      %s28 = ssub.s32 %s20, %s27
      %p29 = scmp.eq.s32.totalorder %s28, 0
      %s31 = sadd.s32 %s30, 1
      %s32 = scalar_select %p29, %s30, %s31
      %p35 = pneg %p29
      %p36 = scmp.eq.s32.totalorder %s20, 1
      %p37 = por %p35, %p36
      %p38 = scmp.ne.s32.totalorder %s30, %s33
      %p39 = scmp.eq.s32.totalorder %s20, 0
      %p40 = por %p38, %p39
      %p41 = scmp.ne.s32.totalorder %s30, %s33
      %p42 = scmp.eq.s32.totalorder %s25, 1
      %p43 = por %p41, %p42
      %p44 = scmp.ne.s32.totalorder %s33, %s34
      %p45 = scmp.eq.s32.totalorder %s25, 0
      %p46 = por %p44, %p45
      %p47 = scmp.ne.s32.totalorder %s33, %s34
      %p48 = scmp.eq.s32.totalorder %s26, 1
      %p49 = por %p47, %p48
      %p51 = scmp.ne.s32.totalorder %s34, %s50
      %p52 = scmp.eq.s32.totalorder %s26, 0
      %p53 = por %p51, %p52
      %s54 = ssub.s32 %s20, %s27
      %p55 = scmp.eq.s32.totalorder %s54, 0
      %s57 = sadd.s32 %s56, 1
      %s58 = scalar_select %p55, %s56, %s57
      %p61 = pneg %p55
      %p62 = scmp.eq.s32.totalorder %s20, 1
      %p63 = por %p61, %p62
      %p64 = scmp.ne.s32.totalorder %s56, %s59
      %p65 = scmp.eq.s32.totalorder %s20, 0
      %p66 = por %p64, %p65
      %p67 = scmp.ne.s32.totalorder %s56, %s59
      %p68 = scmp.eq.s32.totalorder %s25, 1
      %p69 = por %p67, %p68
      %p70 = scmp.ne.s32.totalorder %s59, %s60
      %p71 = scmp.eq.s32.totalorder %s25, 0
      %p72 = por %p70, %p71
      %p73 = scmp.ne.s32.totalorder %s59, %s60
      %p74 = scmp.eq.s32.totalorder %s26, 1
      %p75 = por %p73, %p74
      %p77 = scmp.ne.s32.totalorder %s60, %s76
      %p78 = scmp.eq.s32.totalorder %s26, 0
      %p79 = por %p77, %p78
      %s80 = ssub.s32 %s20, %s27
      %p81 = scmp.eq.s32.totalorder %s80, 0
      %s83 = sadd.s32 %s82, 1
      %s84 = scalar_select %p81, %s82, %s83
      %p87 = pneg %p81
      %p88 = scmp.eq.s32.totalorder %s20, 1
      %p89 = por %p87, %p88
      %p90 = scmp.ne.s32.totalorder %s82, %s85
      %p91 = scmp.eq.s32.totalorder %s20, 0
      %p92 = por %p90, %p91
      %p93 = scmp.ne.s32.totalorder %s82, %s85
      %p94 = scmp.eq.s32.totalorder %s25, 1
      %p95 = por %p93, %p94
      %p96 = scmp.ne.s32.totalorder %s85, %s86
      %p97 = scmp.eq.s32.totalorder %s25, 0
      %p98 = por %p96, %p97
      %p99 = scmp.ne.s32.totalorder %s85, %s86
      %p100 = scmp.eq.s32.totalorder %s26, 1
      %p101 = por %p99, %p100
      %p103 = scmp.ne.s32.totalorder %s86, %s102
      %p104 = scmp.eq.s32.totalorder %s26, 0
      %p105 = por %p103, %p104
      %s106 = ssub.s32 %s20, %s27
      %p107 = scmp.eq.s32.totalorder %s106, 0
      %s109 = sadd.s32 %s108, 1
      %s110 = scalar_select %p107, %s108, %s109
      %p113 = pneg %p107
      %p114 = scmp.eq.s32.totalorder %s20, 1
      %p115 = por %p113, %p114
      %p116 = scmp.ne.s32.totalorder %s108, %s111
      %p117 = scmp.eq.s32.totalorder %s20, 0
      %p118 = por %p116, %p117
      %p119 = scmp.ne.s32.totalorder %s108, %s111
      %p120 = scmp.eq.s32.totalorder %s25, 1
      %p121 = por %p119, %p120
      %p122 = scmp.ne.s32.totalorder %s111, %s112
      %p123 = scmp.eq.s32.totalorder %s25, 0
      %p124 = por %p122, %p123
      %p125 = scmp.ne.s32.totalorder %s111, %s112
      %p126 = scmp.eq.s32.totalorder %s26, 1
      %p127 = por %p125, %p126
      %p129 = scmp.ne.s32.totalorder %s112, %s128
      %p130 = scmp.eq.s32.totalorder %s26, 0
      %p131 = por %p129, %p130
      %p132 = scmp.le.s32.totalorder 1, %s20
      %p133 = scmp.lt.s32.totalorder %s20, 3
      %p134 = pnand %p132, %p133
      %p135 = pneg %p134
      // Predicated region
      $region9: #{tpu_custom_call.1} parent=5 // pred_check
        _
      $region10: #{tpu_custom_call.1} parent=5 // pred_check_branch
        %137 = sbr.rel (%p134) target = $region12
      $region11: #{tpu_custom_call.1} parent=5 // pred_region
        %s138 = ssub.s32 %s20, 1
      $region12: #{tpu_custom_call.1} parent=5 // pred_fallthru
        _
      %p139 = scmp.lt.s32.totalorder %s20, 2
      // Predicated region
      $region13: #{tpu_custom_call.1} parent=5 // pred_check
        %p140 = pneg %p139
      $region14: #{tpu_custom_call.1} parent=5 // pred_check_branch
        %142 = sbr.rel (%p140) target = $region16
      $region15: #{tpu_custom_call.1} parent=5 // pred_region
        // Predicated region
        $region17: #{tpu_custom_call.1} parent=15 // pred_check
          %p143 = pneg %p40
        $region18: #{tpu_custom_call.1} parent=15 // pred_check_branch
          %145 = sbr.rel (%p143) target = $region20
        $region19: #{tpu_custom_call.1} parent=15 // pred_region
          %s146 = sand.u32 %s30, 1
          %s147 = scalar_lea.sflag [#allocation5], %s146
          %s148 = sand.u32 %s30, 1
          %s149 = smul.addr %s148, 32
          %s150 = scalar_lea.vmem [#allocation4], %s149
          %s151 = smul.u32 4, %s20
          %s153 = ssub.s32 512, 512
          %154 = vsyncadd %s147, %s153
          %s155 = smul.addr %s151, 2
          %s156 = smul.addr %s155, 64
          %s157 = scalar_lea.hbm %s1, %s156
          %s158 = sshll.u32 %s150, 4
          %s159 = int_to_ptr.vmem [resolvable:$true] %s158
          %164 = dma.hbm_to_vmem [thread:$0]  %s157, 512, %s159, %s147, 64, 64, 4
        $region20: #{tpu_custom_call.1} parent=15 // pred_fallthru
          _
        // Predicated region
        $region21: #{tpu_custom_call.1} parent=15 // pred_check
          %p165 = pneg %p66
        $region22: #{tpu_custom_call.1} parent=15 // pred_check_branch
          %167 = sbr.rel (%p165) target = $region24
        $region23: #{tpu_custom_call.1} parent=15 // pred_region
          %s168 = sand.u32 %s20, 1
          %s169 = scalar_lea.sflag [#allocation8], %s168
          %s170 = sand.u32 %s56, 1
          %s171 = smul.addr %s170, 128
          %s172 = scalar_lea.vmem [#allocation7], %s171
          %s173 = smul.u32 4, %s20
          %s175 = ssub.s32 2048, 2048
          %176 = vsyncadd %s169, %s175
          %s177 = smul.addr %s173, 8
          %s178 = smul.addr %s177, 64
          %s179 = scalar_lea.hbm %s2, %s178
          %s180 = sshll.u32 %s172, 4
          %s181 = int_to_ptr.vmem [resolvable:$true] %s180
          %186 = dma.hbm_to_vmem [thread:$0]  %s179, 2048, %s181, %s169, 64, 64, 4
        $region24: #{tpu_custom_call.1} parent=15 // pred_fallthru
          _
        // Predicated region
        $region25: #{tpu_custom_call.1} parent=15 // pred_check
          %p187 = pneg %p92
        $region26: #{tpu_custom_call.1} parent=15 // pred_check_branch
          %189 = sbr.rel (%p187) target = $region28
        $region27: #{tpu_custom_call.1} parent=15 // pred_region
          %s190 = sand.u32 %s20, 1
          %s191 = scalar_lea.sflag [#allocation8], %s190
          %s192 = sand.u32 %s82, 1
          %s193 = smul.addr %s192, 128
          %s194 = scalar_lea.vmem [#allocation9], %s193
          %s195 = smul.u32 4, %s20
          %s197 = ssub.s32 2048, 2048
          %198 = vsyncadd %s191, %s197
          %s199 = smul.addr %s195, 8
          %s200 = smul.addr %s199, 64
          %s201 = scalar_lea.hbm %s3, %s200
          %s202 = sshll.u32 %s194, 4
          %s203 = int_to_ptr.vmem [resolvable:$true] %s202
          %208 = dma.hbm_to_vmem [thread:$0]  %s201, 2048, %s203, %s191, 64, 64, 4
        $region28: #{tpu_custom_call.1} parent=15 // pred_fallthru
          _
      $region16: #{tpu_custom_call.1} parent=5 // pred_fallthru
        _
      %p209 = scmp.le.s32.totalorder 1, %s20
      %p210 = scmp.lt.s32.totalorder %s20, 3
      %p211 = pnand %p209, %p210
      %p212 = pneg %p211
      // Predicated region
      $region29: #{tpu_custom_call.1} parent=5 // pred_check
        _
      $region30: #{tpu_custom_call.1} parent=5 // pred_check_branch
        %214 = sbr.rel (%p211) target = $region32
      $region31: #{tpu_custom_call.1} parent=5 // pred_region
        %s215 = ssub.s32 %s20, 1
        %s216 = sand.u32 %s33, 1
        %s217 = scalar_lea.sflag [#allocation5], %s216
        %s218 = sand.u32 %s33, 1
        %s219 = smul.addr %s218, 32
        %s220 = scalar_lea.vmem [#allocation4], %s219
        // Predicated region
        $region33: #{tpu_custom_call.1} parent=31 // pred_check
          %p221 = pneg %p46
        $region34: #{tpu_custom_call.1} parent=31 // pred_check_branch
          %223 = sbr.rel (%p221) target = $region36
        $region35: #{tpu_custom_call.1} parent=31 // pred_region
          %224 = dma.done %s217, 512
        $region36: #{tpu_custom_call.1} parent=31 // pred_fallthru
          _
        %s225 = sand.u32 %s25, 1
        %s226 = scalar_lea.sflag [#allocation8], %s225
        %s227 = sand.u32 %s59, 1
        %s228 = smul.addr %s227, 128
        %s229 = scalar_lea.vmem [#allocation7], %s228
        // Predicated region
        $region37: #{tpu_custom_call.1} parent=31 // pred_check
          %p230 = pneg %p72
        $region38: #{tpu_custom_call.1} parent=31 // pred_check_branch
          %232 = sbr.rel (%p230) target = $region40
        $region39: #{tpu_custom_call.1} parent=31 // pred_region
          %233 = dma.done %s226, 2048
        $region40: #{tpu_custom_call.1} parent=31 // pred_fallthru
          _
        %s234 = sand.u32 %s25, 1
        %s235 = scalar_lea.sflag [#allocation8], %s234
        %s236 = sand.u32 %s85, 1
        %s237 = smul.addr %s236, 128
        %s238 = scalar_lea.vmem [#allocation9], %s237
        // Predicated region
        $region41: #{tpu_custom_call.1} parent=31 // pred_check
          %p239 = pneg %p98
        $region42: #{tpu_custom_call.1} parent=31 // pred_check_branch
          %241 = sbr.rel (%p239) target = $region44
        $region43: #{tpu_custom_call.1} parent=31 // pred_region
          %242 = dma.done %s235, 2048
        $region44: #{tpu_custom_call.1} parent=31 // pred_fallthru
          _
        %s243 = sand.u32 %s33, 1
        %s244 = scalar_lea.sflag [#allocation5], %s243
        %s245 = sand.u32 %s33, 1
        %s246 = smul.addr %s245, 32
        %s247 = scalar_lea.vmem [#allocation4], %s246
        %p248 = pneg %p46
        %p249 = pneg %p43
        %s250 = sand.u32 %s25, 1
        %s251 = scalar_lea.sflag [#allocation8], %s250
        %s252 = sand.u32 %s59, 1
        %s253 = smul.addr %s252, 128
        %s254 = scalar_lea.vmem [#allocation7], %s253
        %p255 = pneg %p72
        %p256 = pneg %p69
        %s257 = sand.u32 %s25, 1
        %s258 = scalar_lea.sflag [#allocation8], %s257
        %s259 = sand.u32 %s85, 1
        %s260 = smul.addr %s259, 128
        %s261 = scalar_lea.vmem [#allocation9], %s260
        %p262 = pneg %p98
        %p263 = pneg %p95
        %p264 = pneg %p124
        %p265 = pneg %p121
        %s266 = sand.u32 %s111, 1
        %s267 = scalar_lea.sflag [#allocation6], %s266
        %s268 = sand.u32 %s111, 1
        %s269 = smul.addr %s268, 64
        %s270 = scalar_lea.vmem [#allocation10], %s269
        %s271 = smul.u32 4, %s25
        %s272 = smul.u32 4, %s25
        %s273 = smul.u32 4, %s25
        %s274 = smul.u32 4, %s25
        %v277 = vld [vmem:[%s220] sm:$0xf]
        %v278 = vld [vmem:[%s220 + $0x4] sm:$0xf]
        %v279 = vld [vmem:[%s220 + $0x8] sm:$0xf]
        %v280 = vld [vmem:[%s220 + $0xc] sm:$0xf]
        %v281 = vld [vmem:[%s220 + $0x10] sm:$0xf]
        %v282 = vld [vmem:[%s220 + $0x14] sm:$0xf]
        %v283 = vld [vmem:[%s220 + $0x18] sm:$0xf]
        %v284 = vld [vmem:[%s220 + $0x1c] sm:$0xf]
        %v285 = vmul.bf16 %v277, 1090535680
        %v286 = vmul.bf16 %v278, 1090535680
        %v287 = vmul.bf16 %v279, 1090535680
        %v288 = vmul.bf16 %v280, 1090535680
        %v289 = vmul.bf16 %v281, 1090535680
        %v290 = vmul.bf16 %v282, 1090535680
        %v291 = vmul.bf16 %v283, 1090535680
        %v292 = vmul.bf16 %v284, 1090535680
        %v293 = vld [vmem:[%s229] sm:$0xf]
        %v294 = vld [vmem:[%s229 + $0x4] sm:$0xf]
        %v295 = vld [vmem:[%s229 + $0x8] sm:$0xf]
        %v296 = vld [vmem:[%s229 + $0xc] sm:$0xf]
        %v297 = vld [vmem:[%s229 + $0x10] sm:$0xf]
        %v298 = vld [vmem:[%s229 + $0x14] sm:$0xf]
        %v299 = vld [vmem:[%s229 + $0x18] sm:$0xf]
        %v300 = vld [vmem:[%s229 + $0x1c] sm:$0xf]
        %v301 = vld [vmem:[%s229 + $0x20] sm:$0xf]
        %v302 = vld [vmem:[%s229 + $0x24] sm:$0xf]
        %v303 = vld [vmem:[%s229 + $0x28] sm:$0xf]
        %v304 = vld [vmem:[%s229 + $0x2c] sm:$0xf]
        %v305 = vld [vmem:[%s229 + $0x30] sm:$0xf]
        %v306 = vld [vmem:[%s229 + $0x34] sm:$0xf]
        %v307 = vld [vmem:[%s229 + $0x38] sm:$0xf]
        %v308 = vld [vmem:[%s229 + $0x3c] sm:$0xf]
        %v309 = vld [vmem:[%s229 + $0x40] sm:$0xf]
        %v310 = vld [vmem:[%s229 + $0x44] sm:$0xf]
        %v311 = vld [vmem:[%s229 + $0x48] sm:$0xf]
        %v312 = vld [vmem:[%s229 + $0x4c] sm:$0xf]
        %v313 = vld [vmem:[%s229 + $0x50] sm:$0xf]
        %v314 = vld [vmem:[%s229 + $0x54] sm:$0xf]
        %v315 = vld [vmem:[%s229 + $0x58] sm:$0xf]
        %v316 = vld [vmem:[%s229 + $0x5c] sm:$0xf]
        %v317 = vld [vmem:[%s229 + $0x60] sm:$0xf]
        %v318 = vld [vmem:[%s229 + $0x64] sm:$0xf]
        %v319 = vld [vmem:[%s229 + $0x68] sm:$0xf]
        %v320 = vld [vmem:[%s229 + $0x6c] sm:$0xf]
        %v321 = vld [vmem:[%s229 + $0x70] sm:$0xf]
        %v322 = vld [vmem:[%s229 + $0x74] sm:$0xf]
        %v323 = vld [vmem:[%s229 + $0x78] sm:$0xf]
        %v324 = vld [vmem:[%s229 + $0x7c] sm:$0xf]
        %v327 = vunpack.c.l.b16 %v285
        %v328 = vunpack.c.l.b16 %v286
        %v329 = vpack.c.b16 %v328, %v327
        %v338 = vunpack.c.l.b16 %v293
        %v339 = vunpack.c.l.b16 %v294
        %v340 = vunpack.c.l.b16 %v295
        %v341 = vunpack.c.l.b16 %v296
        %v342 = vunpack.c.l.b16 %v297
        %v343 = vunpack.c.l.b16 %v298
        %v344 = vunpack.c.l.b16 %v299
        %v345 = vunpack.c.l.b16 %v300
        %v346 = vpack.c.b16 %v339, %v338
        %v347 = vpack.c.b16 %v341, %v340
        %v348 = vpack.c.b16 %v343, %v342
        %v349 = vpack.c.b16 %v345, %v344
        %vm350 = vcmask 523264
        %v352 = vsel %vm350, %v329, 0
        %v355 = vsel %vm350, %v346, 0
        %v358 = vsel %vm350, %v347, 0
        %v361 = vsel %vm350, %v348, 0
        %v364 = vsel %vm350, %v349, 0
        %366 = vmatprep.subr.bf16.mxu0 0
        %367 = vmatpush1.bf16.xpose.msra.mxu0 %v355
        %368 = vmatprep.subr.bf16.mxu0 0
        %369 = vmatpush1.bf16.xpose.msra.mxu0 %v358
        %370 = vmatprep.subr.bf16.mxu0 0
        %371 = vmatpush1.bf16.xpose.msra.mxu0 %v361
        %372 = vmatprep.subr.bf16.mxu0 0
        %373 = vmatpush1.bf16.xpose.msra.mxu0 %v364
        %374 = vmatprep.subr.bf16.mxu0 0
        %375 = vmatpush1.bf16.xpose.msra.mxu0 0
        %376 = vmatprep.subr.bf16.mxu0 0
        %377 = vmatpush1.bf16.xpose.msra.mxu0 0
        %378 = vmatprep.subr.bf16.mxu0 0
        %379 = vmatpush1.bf16.xpose.msra.mxu0 0
        %380 = vmatprep.subr.bf16.mxu0 0
        %381 = vmatpush1.bf16.xpose.msra.mxu0 0
        %382 = vmatprep.subr.bf16.mxu0 0
        %383 = vmatpush1.bf16.xpose.msra.mxu0 0
        %384 = vmatprep.subr.bf16.mxu0 0
        %385 = vmatpush1.bf16.xpose.msra.mxu0 0
        %386 = vmatprep.subr.bf16.mxu0 0
        %387 = vmatpush1.bf16.xpose.msra.mxu0 0
        %388 = vmatprep.subr.bf16.mxu0 0
        %389 = vmatpush1.bf16.xpose.msra.mxu0 0
        %390 = vmatprep.subr.bf16.mxu0 0
        %391 = vmatpush1.bf16.xpose.msra.mxu0 0
        %392 = vmatprep.subr.bf16.mxu0 0
        %393 = vmatpush1.bf16.xpose.msra.mxu0 0
        %394 = vmatprep.subr.bf16.mxu0 0
        %395 = vmatpush1.bf16.xpose.msra.mxu0 0
        %396 = vmatprep.subr.bf16.mxu0 0
        %397 = vmatpush1.bf16.xpose.msra.mxu0 0
        %398 = vmatprep.mubr.bf16.mxu0 0
        %399 = vmatmul.mubr.bf16.gmra.mrb[0].mxu0 %v352
        %v400 = vpop.f32.mrb[0].mxu0
        %v401 = vadd.f32 0.0, %v400
        %v402 = vpop.f32.mrb[0].mxu0
        %v403 = vpop.f32.mrb[0].mxu0
        %v404 = vadd.f32 0.0, %v403
        %v405 = vpop.f32.mrb[0].mxu0
        %406 = vdwg.mxu0
        %v409 = vunpack.c.l.b16 %v287
        %v410 = vunpack.c.l.b16 %v288
        %v411 = vpack.c.b16 %v410, %v409
        %v420 = vunpack.c.l.b16 %v301
        %v421 = vunpack.c.l.b16 %v302
        %v422 = vunpack.c.l.b16 %v303
        %v423 = vunpack.c.l.b16 %v304
        %v424 = vunpack.c.l.b16 %v305
        %v425 = vunpack.c.l.b16 %v306
        %v426 = vunpack.c.l.b16 %v307
        %v427 = vunpack.c.l.b16 %v308
        %v428 = vpack.c.b16 %v421, %v420
        %v429 = vpack.c.b16 %v423, %v422
        %v430 = vpack.c.b16 %v425, %v424
        %v431 = vpack.c.b16 %v427, %v426
        %v433 = vsel %vm350, %v411, 0
        %v436 = vsel %vm350, %v428, 0
        %v439 = vsel %vm350, %v429, 0
        %v442 = vsel %vm350, %v430, 0
        %v445 = vsel %vm350, %v431, 0
        %447 = vmatprep.subr.bf16.mxu0 0
        %448 = vmatpush1.bf16.xpose.msra.mxu0 %v436
        %449 = vmatprep.subr.bf16.mxu0 0
        %450 = vmatpush1.bf16.xpose.msra.mxu0 %v439
        %451 = vmatprep.subr.bf16.mxu0 0
        %452 = vmatpush1.bf16.xpose.msra.mxu0 %v442
        %453 = vmatprep.subr.bf16.mxu0 0
        %454 = vmatpush1.bf16.xpose.msra.mxu0 %v445
        %455 = vmatprep.subr.bf16.mxu0 0
        %456 = vmatpush1.bf16.xpose.msra.mxu0 0
        %457 = vmatprep.subr.bf16.mxu0 0
        %458 = vmatpush1.bf16.xpose.msra.mxu0 0
        %459 = vmatprep.subr.bf16.mxu0 0
        %460 = vmatpush1.bf16.xpose.msra.mxu0 0
        %461 = vmatprep.subr.bf16.mxu0 0
        %462 = vmatpush1.bf16.xpose.msra.mxu0 0
        %463 = vmatprep.subr.bf16.mxu0 0
        %464 = vmatpush1.bf16.xpose.msra.mxu0 0
        %465 = vmatprep.subr.bf16.mxu0 0
        %466 = vmatpush1.bf16.xpose.msra.mxu0 0
        %467 = vmatprep.subr.bf16.mxu0 0
        %468 = vmatpush1.bf16.xpose.msra.mxu0 0
        %469 = vmatprep.subr.bf16.mxu0 0
        %470 = vmatpush1.bf16.xpose.msra.mxu0 0
        %471 = vmatprep.subr.bf16.mxu0 0
        %472 = vmatpush1.bf16.xpose.msra.mxu0 0
        %473 = vmatprep.subr.bf16.mxu0 0
        %474 = vmatpush1.bf16.xpose.msra.mxu0 0
        %475 = vmatprep.subr.bf16.mxu0 0
        %476 = vmatpush1.bf16.xpose.msra.mxu0 0
        %477 = vmatprep.subr.bf16.mxu0 0
        %478 = vmatpush1.bf16.xpose.msra.mxu0 0
        %479 = vmatprep.mubr.bf16.mxu0 0
        %480 = vmatmul.mubr.bf16.gmra.mrb[0].mxu0 %v433
        %v481 = vpop.f32.mrb[0].mxu0
        %v482 = vadd.f32 0.0, %v481
        %v483 = vpop.f32.mrb[0].mxu0
        %v484 = vpop.f32.mrb[0].mxu0
        %v485 = vadd.f32 0.0, %v484
        %v486 = vpop.f32.mrb[0].mxu0
        %487 = vdwg.mxu0
        %v490 = vunpack.c.l.b16 %v289
        %v491 = vunpack.c.l.b16 %v290
        %v492 = vpack.c.b16 %v491, %v490
        %v501 = vunpack.c.l.b16 %v309
        %v502 = vunpack.c.l.b16 %v310
        %v503 = vunpack.c.l.b16 %v311
        %v504 = vunpack.c.l.b16 %v312
        %v505 = vunpack.c.l.b16 %v313
        %v506 = vunpack.c.l.b16 %v314
        %v507 = vunpack.c.l.b16 %v315
        %v508 = vunpack.c.l.b16 %v316
        %v509 = vpack.c.b16 %v502, %v501
        %v510 = vpack.c.b16 %v504, %v503
        %v511 = vpack.c.b16 %v506, %v505
        %v512 = vpack.c.b16 %v508, %v507
        %v514 = vsel %vm350, %v492, 0
        %v517 = vsel %vm350, %v509, 0
        %v520 = vsel %vm350, %v510, 0
        %v523 = vsel %vm350, %v511, 0
        %v526 = vsel %vm350, %v512, 0
        %528 = vmatprep.subr.bf16.mxu0 0
        %529 = vmatpush1.bf16.xpose.msra.mxu0 %v517
        %530 = vmatprep.subr.bf16.mxu0 0
        %531 = vmatpush1.bf16.xpose.msra.mxu0 %v520
        %532 = vmatprep.subr.bf16.mxu0 0
        %533 = vmatpush1.bf16.xpose.msra.mxu0 %v523
        %534 = vmatprep.subr.bf16.mxu0 0
        %535 = vmatpush1.bf16.xpose.msra.mxu0 %v526
        %536 = vmatprep.subr.bf16.mxu0 0
        %537 = vmatpush1.bf16.xpose.msra.mxu0 0
        %538 = vmatprep.subr.bf16.mxu0 0
        %539 = vmatpush1.bf16.xpose.msra.mxu0 0
        %540 = vmatprep.subr.bf16.mxu0 0
        %541 = vmatpush1.bf16.xpose.msra.mxu0 0
        %542 = vmatprep.subr.bf16.mxu0 0
        %543 = vmatpush1.bf16.xpose.msra.mxu0 0
        %544 = vmatprep.subr.bf16.mxu0 0
        %545 = vmatpush1.bf16.xpose.msra.mxu0 0
        %546 = vmatprep.subr.bf16.mxu0 0
        %547 = vmatpush1.bf16.xpose.msra.mxu0 0
        %548 = vmatprep.subr.bf16.mxu0 0
        %549 = vmatpush1.bf16.xpose.msra.mxu0 0
        %550 = vmatprep.subr.bf16.mxu0 0
        %551 = vmatpush1.bf16.xpose.msra.mxu0 0
        %552 = vmatprep.subr.bf16.mxu0 0
        %553 = vmatpush1.bf16.xpose.msra.mxu0 0
        %554 = vmatprep.subr.bf16.mxu0 0
        %555 = vmatpush1.bf16.xpose.msra.mxu0 0
        %556 = vmatprep.subr.bf16.mxu0 0
        %557 = vmatpush1.bf16.xpose.msra.mxu0 0
        %558 = vmatprep.subr.bf16.mxu0 0
        %559 = vmatpush1.bf16.xpose.msra.mxu0 0
        %560 = vmatprep.mubr.bf16.mxu0 0
        %561 = vmatmul.mubr.bf16.gmra.mrb[0].mxu0 %v514
        %v562 = vpop.f32.mrb[0].mxu0
        %v563 = vadd.f32 0.0, %v562
        %v564 = vpop.f32.mrb[0].mxu0
        %v565 = vpop.f32.mrb[0].mxu0
        %v566 = vadd.f32 0.0, %v565
        %v567 = vpop.f32.mrb[0].mxu0
        %568 = vdwg.mxu0
        %v571 = vunpack.c.l.b16 %v291
        %v572 = vunpack.c.l.b16 %v292
        %v573 = vpack.c.b16 %v572, %v571
        %v582 = vunpack.c.l.b16 %v317
        %v583 = vunpack.c.l.b16 %v318
        %v584 = vunpack.c.l.b16 %v319
        %v585 = vunpack.c.l.b16 %v320
        %v586 = vunpack.c.l.b16 %v321
        %v587 = vunpack.c.l.b16 %v322
        %v588 = vunpack.c.l.b16 %v323
        %v589 = vunpack.c.l.b16 %v324
        %v590 = vpack.c.b16 %v583, %v582
        %v591 = vpack.c.b16 %v585, %v584
        %v592 = vpack.c.b16 %v587, %v586
        %v593 = vpack.c.b16 %v589, %v588
        %v595 = vsel %vm350, %v573, 0
        %v598 = vsel %vm350, %v590, 0
        %v601 = vsel %vm350, %v591, 0
        %v604 = vsel %vm350, %v592, 0
        %v607 = vsel %vm350, %v593, 0
        %609 = vmatprep.subr.bf16.mxu0 0
        %610 = vmatpush1.bf16.xpose.msra.mxu0 %v598
        %611 = vmatprep.subr.bf16.mxu0 0
        %612 = vmatpush1.bf16.xpose.msra.mxu0 %v601
        %613 = vmatprep.subr.bf16.mxu0 0
        %614 = vmatpush1.bf16.xpose.msra.mxu0 %v604
        %615 = vmatprep.subr.bf16.mxu0 0
        %616 = vmatpush1.bf16.xpose.msra.mxu0 %v607
        %617 = vmatprep.subr.bf16.mxu0 0
        %618 = vmatpush1.bf16.xpose.msra.mxu0 0
        %619 = vmatprep.subr.bf16.mxu0 0
        %620 = vmatpush1.bf16.xpose.msra.mxu0 0
        %621 = vmatprep.subr.bf16.mxu0 0
        %622 = vmatpush1.bf16.xpose.msra.mxu0 0
        %623 = vmatprep.subr.bf16.mxu0 0
        %624 = vmatpush1.bf16.xpose.msra.mxu0 0
        %625 = vmatprep.subr.bf16.mxu0 0
        %626 = vmatpush1.bf16.xpose.msra.mxu0 0
        %627 = vmatprep.subr.bf16.mxu0 0
        %628 = vmatpush1.bf16.xpose.msra.mxu0 0
        %629 = vmatprep.subr.bf16.mxu0 0
        %630 = vmatpush1.bf16.xpose.msra.mxu0 0
        %631 = vmatprep.subr.bf16.mxu0 0
        %632 = vmatpush1.bf16.xpose.msra.mxu0 0
        %633 = vmatprep.subr.bf16.mxu0 0
        %634 = vmatpush1.bf16.xpose.msra.mxu0 0
        %635 = vmatprep.subr.bf16.mxu0 0
        %636 = vmatpush1.bf16.xpose.msra.mxu0 0
        %637 = vmatprep.subr.bf16.mxu0 0
        %638 = vmatpush1.bf16.xpose.msra.mxu0 0
        %639 = vmatprep.subr.bf16.mxu0 0
        %640 = vmatpush1.bf16.xpose.msra.mxu0 0
        %641 = vmatprep.mubr.bf16.mxu0 0
        %642 = vmatmul.mubr.bf16.gmra.mrb[0].mxu0 %v595
        %v643 = vpop.f32.mrb[0].mxu0
        %v644 = vadd.f32 0.0, %v643
        %v645 = vpop.f32.mrb[0].mxu0
        %v646 = vpop.f32.mrb[0].mxu0
        %v647 = vadd.f32 0.0, %v646
        %v648 = vpop.f32.mrb[0].mxu0
        %649 = vdwg.mxu0
        %v650 = vsel %vm350, %v401, -inf
        %651 = vmax.xlane.f32.xlu0 %v650
        %v652 = vpop.xlane.xlu0 %651
        %v653 = vsel %vm350, %v404, -inf
        %654 = vmax.xlane.f32.xlu0 %v653
        %v655 = vpop.xlane.xlu0 %654
        %v656 = vsel %vm350, %v482, -inf
        %657 = vmax.xlane.f32.xlu0 %v656
        %v658 = vpop.xlane.xlu0 %657
        %v659 = vsel %vm350, %v485, -inf
        %660 = vmax.xlane.f32.xlu0 %v659
        %v661 = vpop.xlane.xlu0 %660
        %v662 = vsel %vm350, %v563, -inf
        %663 = vmax.xlane.f32.xlu0 %v662
        %v664 = vpop.xlane.xlu0 %663
        %v665 = vsel %vm350, %v566, -inf
        %666 = vmax.xlane.f32.xlu0 %v665
        %v667 = vpop.xlane.xlu0 %666
        %v668 = vsel %vm350, %v644, -inf
        %669 = vmax.xlane.f32.xlu0 %v668
        %v670 = vpop.xlane.xlu0 %669
        %v671 = vsel %vm350, %v647, -inf
        %672 = vmax.xlane.f32.xlu0 %v671
        %v673 = vpop.xlane.xlu0 %672
        %v674 = vsub.f32 %v401, %v652
        %v675 = vsub.f32 %v404, %v655
        %v676 = vsub.f32 %v482, %v658
        %v677 = vsub.f32 %v485, %v661
        %v678 = vsub.f32 %v563, %v664
        %v679 = vsub.f32 %v566, %v667
        %v680 = vsub.f32 %v644, %v670
        %v681 = vsub.f32 %v647, %v673
        %v682 = vmul.f32 %v674, 1.442695
        %v683 = vpow.pop %v682
        %v684 = vmul.f32 %v675, 1.442695
        %v685 = vpow.pop %v684
        %v686 = vmul.f32 %v676, 1.442695
        %v687 = vpow.pop %v686
        %v688 = vmul.f32 %v677, 1.442695
        %v689 = vpow.pop %v688
        %v690 = vmul.f32 %v678, 1.442695
        %v691 = vpow.pop %v690
        %v692 = vmul.f32 %v679, 1.442695
        %v693 = vpow.pop %v692
        %v694 = vmul.f32 %v680, 1.442695
        %v695 = vpow.pop %v694
        %v696 = vmul.f32 %v681, 1.442695
        %v697 = vpow.pop %v696
        %v698 = vsel %vm350, %v683, 0.0
        %699 = vadd.xlane.f32.xlu0 %v698
        %v700 = vpop.xlane.xlu0 %699
        %v701 = vsel %vm350, %v685, 0.0
        %702 = vadd.xlane.f32.xlu0 %v701
        %v703 = vpop.xlane.xlu0 %702
        %v704 = vsel %vm350, %v687, 0.0
        %705 = vadd.xlane.f32.xlu0 %v704
        %v706 = vpop.xlane.xlu0 %705
        %v707 = vsel %vm350, %v689, 0.0
        %708 = vadd.xlane.f32.xlu0 %v707
        %v709 = vpop.xlane.xlu0 %708
        %v710 = vsel %vm350, %v691, 0.0
        %711 = vadd.xlane.f32.xlu0 %v710
        %v712 = vpop.xlane.xlu0 %711
        %v713 = vsel %vm350, %v693, 0.0
        %714 = vadd.xlane.f32.xlu0 %v713
        %v715 = vpop.xlane.xlu0 %714
        %v716 = vsel %vm350, %v695, 0.0
        %717 = vadd.xlane.f32.xlu0 %v716
        %v718 = vpop.xlane.xlu0 %717
        %v719 = vsel %vm350, %v697, 0.0
        %720 = vadd.xlane.f32.xlu0 %v719
        %v721 = vpop.xlane.xlu0 %720
        %v722 = vrcp.pop %v700
        %v723 = vrcp.pop %v703
        %v724 = vrcp.pop %v706
        %v725 = vrcp.pop %v709
        %v726 = vrcp.pop %v712
        %v727 = vrcp.pop %v715
        %v728 = vrcp.pop %v718
        %v729 = vrcp.pop %v721
        %v730 = vmul.f32 %v683, %v722
        %v731 = vmul.f32 %v685, %v723
        %v732 = vmul.f32 %v687, %v724
        %v733 = vmul.f32 %v689, %v725
        %v734 = vmul.f32 %v691, %v726
        %v735 = vmul.f32 %v693, %v727
        %v736 = vmul.f32 %v695, %v728
        %v737 = vmul.f32 %v697, %v729
        %v738 = vpack.c.bf16 %v731, %v730
        %v739 = vpack.c.bf16 %v733, %v732
        %v740 = vpack.c.bf16 %v735, %v734
        %v741 = vpack.c.bf16 %v737, %v736
        %v742 = vld [vmem:[%s238] sm:$0xf]
        %v743 = vld [vmem:[%s238 + $0x4] sm:$0xf]
        %v744 = vld [vmem:[%s238 + $0x8] sm:$0xf]
        %v745 = vld [vmem:[%s238 + $0xc] sm:$0xf]
        %v746 = vld [vmem:[%s238 + $0x10] sm:$0xf]
        %v747 = vld [vmem:[%s238 + $0x14] sm:$0xf]
        %v748 = vld [vmem:[%s238 + $0x18] sm:$0xf]
        %v749 = vld [vmem:[%s238 + $0x1c] sm:$0xf]
        %v750 = vld [vmem:[%s238 + $0x20] sm:$0xf]
        %v751 = vld [vmem:[%s238 + $0x24] sm:$0xf]
        %v752 = vld [vmem:[%s238 + $0x28] sm:$0xf]
        %v753 = vld [vmem:[%s238 + $0x2c] sm:$0xf]
        %v754 = vld [vmem:[%s238 + $0x30] sm:$0xf]
        %v755 = vld [vmem:[%s238 + $0x34] sm:$0xf]
        %v756 = vld [vmem:[%s238 + $0x38] sm:$0xf]
        %v757 = vld [vmem:[%s238 + $0x3c] sm:$0xf]
        %v758 = vld [vmem:[%s238 + $0x40] sm:$0xf]
        %v759 = vld [vmem:[%s238 + $0x44] sm:$0xf]
        %v760 = vld [vmem:[%s238 + $0x48] sm:$0xf]
        %v761 = vld [vmem:[%s238 + $0x4c] sm:$0xf]
        %v762 = vld [vmem:[%s238 + $0x50] sm:$0xf]
        %v763 = vld [vmem:[%s238 + $0x54] sm:$0xf]
        %v764 = vld [vmem:[%s238 + $0x58] sm:$0xf]
        %v765 = vld [vmem:[%s238 + $0x5c] sm:$0xf]
        %v766 = vld [vmem:[%s238 + $0x60] sm:$0xf]
        %v767 = vld [vmem:[%s238 + $0x64] sm:$0xf]
        %v768 = vld [vmem:[%s238 + $0x68] sm:$0xf]
        %v769 = vld [vmem:[%s238 + $0x6c] sm:$0xf]
        %v770 = vld [vmem:[%s238 + $0x70] sm:$0xf]
        %v771 = vld [vmem:[%s238 + $0x74] sm:$0xf]
        %v772 = vld [vmem:[%s238 + $0x78] sm:$0xf]
        %v773 = vld [vmem:[%s238 + $0x7c] sm:$0xf]
        %v782 = vunpack.c.l.b16 %v742
        %v783 = vunpack.c.l.b16 %v743
        %v784 = vunpack.c.l.b16 %v744
        %v785 = vunpack.c.l.b16 %v745
        %v786 = vunpack.c.l.b16 %v746
        %v787 = vunpack.c.l.b16 %v747
        %v788 = vunpack.c.l.b16 %v748
        %v789 = vunpack.c.l.b16 %v749
        %v790 = vpack.c.b16 %v783, %v782
        %v791 = vpack.c.b16 %v785, %v784
        %v792 = vpack.c.b16 %v787, %v786
        %v793 = vpack.c.b16 %v789, %v788
        %v799 = vsel %vm350, %v738, 0
        %801 = vmatprep.subr.bf16.mxu0 0
        %802 = vmatpush1.bf16.msra.mxu0 %v790
        %803 = vmatprep.subr.bf16.mxu0 0
        %804 = vmatpush1.bf16.msra.mxu0 %v791
        %805 = vmatprep.subr.bf16.mxu0 0
        %806 = vmatpush1.bf16.msra.mxu0 %v792
        %807 = vmatprep.subr.bf16.mxu0 0
        %808 = vmatpush1.bf16.msra.mxu0 %v793
        %809 = vmatprep.subr.bf16.mxu0 0
        %810 = vmatpush1.bf16.msra.mxu0 0
        %811 = vmatprep.subr.bf16.mxu0 0
        %812 = vmatpush1.bf16.msra.mxu0 0
        %813 = vmatprep.subr.bf16.mxu0 0
        %814 = vmatpush1.bf16.msra.mxu0 0
        %815 = vmatprep.subr.bf16.mxu0 0
        %816 = vmatpush1.bf16.msra.mxu0 0
        %817 = vmatprep.subr.bf16.mxu0 0
        %818 = vmatpush1.bf16.msra.mxu0 0
        %819 = vmatprep.subr.bf16.mxu0 0
        %820 = vmatpush1.bf16.msra.mxu0 0
        %821 = vmatprep.subr.bf16.mxu0 0
        %822 = vmatpush1.bf16.msra.mxu0 0
        %823 = vmatprep.subr.bf16.mxu0 0
        %824 = vmatpush1.bf16.msra.mxu0 0
        %825 = vmatprep.subr.bf16.mxu0 0
        %826 = vmatpush1.bf16.msra.mxu0 0
        %827 = vmatprep.subr.bf16.mxu0 0
        %828 = vmatpush1.bf16.msra.mxu0 0
        %829 = vmatprep.subr.bf16.mxu0 0
        %830 = vmatpush1.bf16.msra.mxu0 0
        %831 = vmatprep.subr.bf16.mxu0 0
        %832 = vmatpush1.bf16.msra.mxu0 0
        %833 = vmatprep.mubr.bf16.mxu0 0
        %834 = vmatmul.mubr.bf16.gmra.mrb[0].mxu0 %v799
        %v835 = vpop.f32.mrb[0].mxu0
        %v836 = vadd.f32 0.0, %v835
        %v837 = vpop.f32.mrb[0].mxu0
        %v838 = vpop.f32.mrb[0].mxu0
        %v839 = vadd.f32 0.0, %v838
        %v840 = vpop.f32.mrb[0].mxu0
        %841 = vdwg.mxu0
        %v850 = vunpack.c.l.b16 %v750
        %v851 = vunpack.c.l.b16 %v751
        %v852 = vunpack.c.l.b16 %v752
        %v853 = vunpack.c.l.b16 %v753
        %v854 = vunpack.c.l.b16 %v754
        %v855 = vunpack.c.l.b16 %v755
        %v856 = vunpack.c.l.b16 %v756
        %v857 = vunpack.c.l.b16 %v757
        %v858 = vpack.c.b16 %v851, %v850
        %v859 = vpack.c.b16 %v853, %v852
        %v860 = vpack.c.b16 %v855, %v854
        %v861 = vpack.c.b16 %v857, %v856
        %v867 = vsel %vm350, %v739, 0
        %869 = vmatprep.subr.bf16.mxu0 0
        %870 = vmatpush1.bf16.msra.mxu0 %v858
        %871 = vmatprep.subr.bf16.mxu0 0
        %872 = vmatpush1.bf16.msra.mxu0 %v859
        %873 = vmatprep.subr.bf16.mxu0 0
        %874 = vmatpush1.bf16.msra.mxu0 %v860
        %875 = vmatprep.subr.bf16.mxu0 0
        %876 = vmatpush1.bf16.msra.mxu0 %v861
        %877 = vmatprep.subr.bf16.mxu0 0
        %878 = vmatpush1.bf16.msra.mxu0 0
        %879 = vmatprep.subr.bf16.mxu0 0
        %880 = vmatpush1.bf16.msra.mxu0 0
        %881 = vmatprep.subr.bf16.mxu0 0
        %882 = vmatpush1.bf16.msra.mxu0 0
        %883 = vmatprep.subr.bf16.mxu0 0
        %884 = vmatpush1.bf16.msra.mxu0 0
        %885 = vmatprep.subr.bf16.mxu0 0
        %886 = vmatpush1.bf16.msra.mxu0 0
        %887 = vmatprep.subr.bf16.mxu0 0
        %888 = vmatpush1.bf16.msra.mxu0 0
        %889 = vmatprep.subr.bf16.mxu0 0
        %890 = vmatpush1.bf16.msra.mxu0 0
        %891 = vmatprep.subr.bf16.mxu0 0
        %892 = vmatpush1.bf16.msra.mxu0 0
        %893 = vmatprep.subr.bf16.mxu0 0
        %894 = vmatpush1.bf16.msra.mxu0 0
        %895 = vmatprep.subr.bf16.mxu0 0
        %896 = vmatpush1.bf16.msra.mxu0 0
        %897 = vmatprep.subr.bf16.mxu0 0
        %898 = vmatpush1.bf16.msra.mxu0 0
        %899 = vmatprep.subr.bf16.mxu0 0
        %900 = vmatpush1.bf16.msra.mxu0 0
        %901 = vmatprep.mubr.bf16.mxu0 0
        %902 = vmatmul.mubr.bf16.gmra.mrb[0].mxu0 %v867
        %v903 = vpop.f32.mrb[0].mxu0
        %v904 = vadd.f32 0.0, %v903
        %v905 = vpop.f32.mrb[0].mxu0
        %v906 = vpop.f32.mrb[0].mxu0
        %v907 = vadd.f32 0.0, %v906
        %v908 = vpop.f32.mrb[0].mxu0
        %909 = vdwg.mxu0
        %v918 = vunpack.c.l.b16 %v758
        %v919 = vunpack.c.l.b16 %v759
        %v920 = vunpack.c.l.b16 %v760
        %v921 = vunpack.c.l.b16 %v761
        %v922 = vunpack.c.l.b16 %v762
        %v923 = vunpack.c.l.b16 %v763
        %v924 = vunpack.c.l.b16 %v764
        %v925 = vunpack.c.l.b16 %v765
        %v926 = vpack.c.b16 %v919, %v918
        %v927 = vpack.c.b16 %v921, %v920
        %v928 = vpack.c.b16 %v923, %v922
        %v929 = vpack.c.b16 %v925, %v924
        %v935 = vsel %vm350, %v740, 0
        %937 = vmatprep.subr.bf16.mxu0 0
        %938 = vmatpush1.bf16.msra.mxu0 %v926
        %939 = vmatprep.subr.bf16.mxu0 0
        %940 = vmatpush1.bf16.msra.mxu0 %v927
        %941 = vmatprep.subr.bf16.mxu0 0
        %942 = vmatpush1.bf16.msra.mxu0 %v928
        %943 = vmatprep.subr.bf16.mxu0 0
        %944 = vmatpush1.bf16.msra.mxu0 %v929
        %945 = vmatprep.subr.bf16.mxu0 0
        %946 = vmatpush1.bf16.msra.mxu0 0
        %947 = vmatprep.subr.bf16.mxu0 0
        %948 = vmatpush1.bf16.msra.mxu0 0
        %949 = vmatprep.subr.bf16.mxu0 0
        %950 = vmatpush1.bf16.msra.mxu0 0
        %951 = vmatprep.subr.bf16.mxu0 0
        %952 = vmatpush1.bf16.msra.mxu0 0
        %953 = vmatprep.subr.bf16.mxu0 0
        %954 = vmatpush1.bf16.msra.mxu0 0
        %955 = vmatprep.subr.bf16.mxu0 0
        %956 = vmatpush1.bf16.msra.mxu0 0
        %957 = vmatprep.subr.bf16.mxu0 0
        %958 = vmatpush1.bf16.msra.mxu0 0
        %959 = vmatprep.subr.bf16.mxu0 0
        %960 = vmatpush1.bf16.msra.mxu0 0
        %961 = vmatprep.subr.bf16.mxu0 0
        %962 = vmatpush1.bf16.msra.mxu0 0
        %963 = vmatprep.subr.bf16.mxu0 0
        %964 = vmatpush1.bf16.msra.mxu0 0
        %965 = vmatprep.subr.bf16.mxu0 0
        %966 = vmatpush1.bf16.msra.mxu0 0
        %967 = vmatprep.subr.bf16.mxu0 0
        %968 = vmatpush1.bf16.msra.mxu0 0
        %969 = vmatprep.mubr.bf16.mxu0 0
        %970 = vmatmul.mubr.bf16.gmra.mrb[0].mxu0 %v935
        %v971 = vpop.f32.mrb[0].mxu0
        %v972 = vadd.f32 0.0, %v971
        %v973 = vpop.f32.mrb[0].mxu0
        %v974 = vpop.f32.mrb[0].mxu0
        %v975 = vadd.f32 0.0, %v974
        %v976 = vpop.f32.mrb[0].mxu0
        %977 = vdwg.mxu0
        %v986 = vunpack.c.l.b16 %v766
        %v987 = vunpack.c.l.b16 %v767
        %v988 = vunpack.c.l.b16 %v768
        %v989 = vunpack.c.l.b16 %v769
        %v990 = vunpack.c.l.b16 %v770
        %v991 = vunpack.c.l.b16 %v771
        %v992 = vunpack.c.l.b16 %v772
        %v993 = vunpack.c.l.b16 %v773
        %v994 = vpack.c.b16 %v987, %v986
        %v995 = vpack.c.b16 %v989, %v988
        %v996 = vpack.c.b16 %v991, %v990
        %v997 = vpack.c.b16 %v993, %v992
        %v1003 = vsel %vm350, %v741, 0
        %1005 = vmatprep.subr.bf16.mxu0 0
        %1006 = vmatpush1.bf16.msra.mxu0 %v994
        %1007 = vmatprep.subr.bf16.mxu0 0
        %1008 = vmatpush1.bf16.msra.mxu0 %v995
        %1009 = vmatprep.subr.bf16.mxu0 0
        %1010 = vmatpush1.bf16.msra.mxu0 %v996
        %1011 = vmatprep.subr.bf16.mxu0 0
        %1012 = vmatpush1.bf16.msra.mxu0 %v997
        %1013 = vmatprep.subr.bf16.mxu0 0
        %1014 = vmatpush1.bf16.msra.mxu0 0
        %1015 = vmatprep.subr.bf16.mxu0 0
        %1016 = vmatpush1.bf16.msra.mxu0 0
        %1017 = vmatprep.subr.bf16.mxu0 0
        %1018 = vmatpush1.bf16.msra.mxu0 0
        %1019 = vmatprep.subr.bf16.mxu0 0
        %1020 = vmatpush1.bf16.msra.mxu0 0
        %1021 = vmatprep.subr.bf16.mxu0 0
        %1022 = vmatpush1.bf16.msra.mxu0 0
        %1023 = vmatprep.subr.bf16.mxu0 0
        %1024 = vmatpush1.bf16.msra.mxu0 0
        %1025 = vmatprep.subr.bf16.mxu0 0
        %1026 = vmatpush1.bf16.msra.mxu0 0
        %1027 = vmatprep.subr.bf16.mxu0 0
        %1028 = vmatpush1.bf16.msra.mxu0 0
        %1029 = vmatprep.subr.bf16.mxu0 0
        %1030 = vmatpush1.bf16.msra.mxu0 0
        %1031 = vmatprep.subr.bf16.mxu0 0
        %1032 = vmatpush1.bf16.msra.mxu0 0
        %1033 = vmatprep.subr.bf16.mxu0 0
        %1034 = vmatpush1.bf16.msra.mxu0 0
        %1035 = vmatprep.subr.bf16.mxu0 0
        %1036 = vmatpush1.bf16.msra.mxu0 0
        %1037 = vmatprep.mubr.bf16.mxu0 0
        %1038 = vmatmul.mubr.bf16.gmra.mrb[0].mxu0 %v1003
        %v1039 = vpop.f32.mrb[0].mxu0
        %v1040 = vadd.f32 0.0, %v1039
        %v1041 = vpop.f32.mrb[0].mxu0
        %v1042 = vpop.f32.mrb[0].mxu0
        %v1043 = vadd.f32 0.0, %v1042
        %v1044 = vpop.f32.mrb[0].mxu0
        %1045 = vdwg.mxu0
        %1046 = vst.msk [vmem:[%s270] sm:$0xff] %vm350, %v836
        %1047 = vst.msk [vmem:[%s270 + $0x8] sm:$0xff] %vm350, %v839
        %1048 = vst.msk [vmem:[%s270 + $0x10] sm:$0xff] %vm350, %v904
        %1049 = vst.msk [vmem:[%s270 + $0x18] sm:$0xff] %vm350, %v907
        %1050 = vst.msk [vmem:[%s270 + $0x20] sm:$0xff] %vm350, %v972
        %1051 = vst.msk [vmem:[%s270 + $0x28] sm:$0xff] %vm350, %v975
        %1052 = vst.msk [vmem:[%s270 + $0x30] sm:$0xff] %vm350, %v1040
        %1053 = vst.msk [vmem:[%s270 + $0x38] sm:$0xff] %vm350, %v1043
        %s1054 = sand.u32 %s111, 1
        %s1055 = scalar_lea.sflag [#allocation6], %s1054
        %s1056 = sand.u32 %s111, 1
        %s1057 = smul.addr %s1056, 64
        %s1058 = scalar_lea.vmem [#allocation10], %s1057
        // Predicated region
        $region45: #{tpu_custom_call.1} parent=31 // pred_check
          %p1059 = pneg %p121
        $region46: #{tpu_custom_call.1} parent=31 // pred_check_branch
          %1061 = sbr.rel (%p1059) target = $region48
        $region47: #{tpu_custom_call.1} parent=31 // pred_region
          %s1062 = smul.u32 4, %s25
          %s1064 = ssub.s32 1024, 1024
          %1065 = vsyncadd %s1055, %s1064
          %s1066 = smul.addr %s1062, 2
          %s1067 = smul.addr %s1066, 128
          %s1068 = scalar_lea.hbm %s4, %s1067
          %s1069 = sshll.u32 %s1058, 4
          %s1070 = int_to_ptr.vmem [resolvable:$true] %s1069
          %1075 = dma.vmem_to_hbm [thread:$0]  %s1070, 1024, %s1068, %s1055, 128, 128, 8
        $region48: #{tpu_custom_call.1} parent=31 // pred_fallthru
          _
      $region32: #{tpu_custom_call.1} parent=5 // pred_fallthru
        _
      %p1076 = scmp.le.s32.totalorder 2, %s20
      // Predicated region
      $region49: #{tpu_custom_call.1} parent=5 // pred_check
        %p1077 = pneg %p1076
      $region50: #{tpu_custom_call.1} parent=5 // pred_check_branch
        %1079 = sbr.rel (%p1077) target = $region52
      $region51: #{tpu_custom_call.1} parent=5 // pred_region
        %s1080 = ssub.s32 %s20, 2
        // Predicated region
        $region53: #{tpu_custom_call.1} parent=51 // pred_check
          %p1081 = pneg %p127
        $region54: #{tpu_custom_call.1} parent=51 // pred_check_branch
          %1083 = sbr.rel (%p1081) target = $region56
        $region55: #{tpu_custom_call.1} parent=51 // pred_region
          %s1084 = sand.u32 %s112, 1
          %s1085 = scalar_lea.sflag [#allocation6], %s1084
          %s1086 = sand.u32 %s112, 1
          %s1087 = smul.addr %s1086, 64
          %s1088 = scalar_lea.vmem [#allocation10], %s1087
          %1089 = dma.done %s1085, 1024
        $region56: #{tpu_custom_call.1} parent=51 // pred_fallthru
          _
      $region52: #{tpu_custom_call.1} parent=5 // pred_fallthru
        _
    $region6: #{tpu_custom_call.1} parent=1 // loop_footer
      %s24 = sadd.s32 1, %s20
    $region7: #{tpu_custom_call.1} parent=1 // loop_footer_branch
      %19 = sbr.rel target = $region3
    $region8: #{tpu_custom_call.1} parent=1 // loop_exit
      _
    %1090 = vsyncpa [#allocation5], 1
    %s1091 = scalar_lea.sflag [#allocation5], 1
    %1092 = vsyncpa %s1091, 1
    %1093 = vsyncpa [#allocation8], 1
    %s1094 = scalar_lea.sflag [#allocation8], 1
    %1095 = vsyncpa %s1094, 1
    %1096 = vsyncpa [#allocation6], 1
    %s1097 = scalar_lea.sflag [#allocation6], 1
    %1098 = vsyncpa %s1097, 1

// kernel: tpu_custom_call.1
$region0: #{tpu_custom_call.1}
  #allocation0 [shape = 'u32[]', space=smem, size = 0x4, offset = 0x4, fixed_abs, tag = 'smem constant byte address 0x4 - core index']
  #allocation1 [shape = 'u32[144,128]{1,0:T(1,128)}', space=vmem, size = 0x12000, scoped, tag = 'internal scratch']
  #allocation2 [shape = 's32[1]{0}', space=sflag, size = 0x4, scoped, tag = 'scoped memory for tpu_custom_call.1']
  #allocation3 [shape = 's32[1]{0:T(128)S(6)}', space=smem, size = 0x200, scoped, tag = 'prefetched SMEM operand 0']
  %s0 = inlined_call_operand.<no memory space> [shape: s32[1], index: 0, kind: input, shape index: {}]
  %s1 = inlined_call_operand.hbm [shape: bf16[8,16,64], index: 1, kind: input, shape index: {}]
  %s2 = inlined_call_operand.hbm [shape: bf16[8,64,64], index: 2, kind: input, shape index: {}]
  %s3 = inlined_call_operand.hbm [shape: bf16[8,64,64], index: 3, kind: input, shape index: {}]
  %s4 = inlined_call_operand.hbm [shape: f32[8,16,64], index: 4, kind: output, shape index: {}]
  %s5 = sld [smem:[#allocation0]]
  $region57: #{tpu_custom_call.1} parent=0
    _
  %s7 = ssub.s32 1, %s5
  %s8 = scalar_select 0, %s7, %s5
  %9 = sst [smem:[#allocation3]] %s0
  $region1: #{tpu_custom_call.1} parent=0
    #allocation4 [shape = 'u8[32768]{0}', space=vmem, size = 0x8000, scoped, tag = 'input window, operand 1']
    #allocation5 [shape = 's32[2]{0}', space=sflag, size = 0x8, scoped, tag = 'scoped memory for tpu_custom_call.1']
    #allocation6 [shape = 's32[2]{0}', space=sflag, size = 0x8, scoped, tag = 'scoped memory for tpu_custom_call.1']
    #allocation7 [shape = 'u8[131072]{0}', space=vmem, size = 0x20000, scoped, tag = 'input window, operand 2']
    #allocation8 [shape = 's32[2]{0}', space=sflag, size = 0x8, scoped, tag = 'scoped memory for tpu_custom_call.1']
    #allocation9 [shape = 'u8[131072]{0}', space=vmem, size = 0x20000, scoped, tag = 'input window, operand 3']
    #allocation10 [shape = 'u8[65536]{0}', space=vmem, size = 0x10000, scoped, tag = 'output window, operand 0']
    %10 = vsyncpa [#allocation5], 0
    %s11 = scalar_lea.sflag [#allocation5], 1
    %12 = vsyncpa %s11, 0
    %13 = vsyncpa [#allocation8], 0
    %s14 = scalar_lea.sflag [#allocation8], 1
    %15 = vsyncpa %s14, 0
    %16 = vsyncpa [#allocation6], 0
    %s17 = scalar_lea.sflag [#allocation6], 1
    %18 = vsyncpa %s17, 0
    loop: start=0, step=1, limit=4
    $region2: #{tpu_custom_call.1} parent=1 // loop_pre_header
      _
    $region3: #{tpu_custom_call.1} parent=1 // loop_header
      %s20 = sphi 0, %s24
      %p21 = scmp.ge.s32.totalorder %s20, 4
      %s30 = sphi 0, %s32
      %s33 = sphi 0, %s30
      %s34 = sphi 0, %s33
      %s50 = sphi 0, %s34
      %s56 = sphi 0, %s58
      %s59 = sphi 0, %s56
      %s60 = sphi 0, %s59
      %s76 = sphi 0, %s60
      %s82 = sphi 0, %s84
      %s85 = sphi 0, %s82
      %s86 = sphi 0, %s85
      %s102 = sphi 0, %s86
      %s108 = sphi 0, %s110
      %s111 = sphi 0, %s108
      %s112 = sphi 0, %s111
      %s128 = sphi 0, %s112
    $region4: #{tpu_custom_call.1} parent=1 // loop_header_branch
      %23 = sbr.rel (%p21) target = $region8
    $region5: #{tpu_custom_call.1} parent=1 // loop_body
      %s25 = ssub.s32 %s20, 1
      %s26 = ssub.s32 %s20, 2
      %s27 = sadd.s32 %s20, 1
      %s28 = ssub.s32 %s20, %s27
      %p29 = scmp.eq.s32.totalorder %s28, 0
      %s31 = sadd.s32 %s30, 1
      %s32 = scalar_select %p29, %s30, %s31
      %p35 = pneg %p29
      %p36 = scmp.eq.s32.totalorder %s20, 1
      %p37 = por %p35, %p36
      %p38 = scmp.ne.s32.totalorder %s30, %s33
      %p39 = scmp.eq.s32.totalorder %s20, 0
      %p40 = por %p38, %p39
      %p41 = scmp.ne.s32.totalorder %s30, %s33
      %p42 = scmp.eq.s32.totalorder %s25, 1
      %p43 = por %p41, %p42
      %p44 = scmp.ne.s32.totalorder %s33, %s34
      %p45 = scmp.eq.s32.totalorder %s25, 0
      %p46 = por %p44, %p45
      %p47 = scmp.ne.s32.totalorder %s33, %s34
      %p48 = scmp.eq.s32.totalorder %s26, 1
      %p49 = por %p47, %p48
      %p51 = scmp.ne.s32.totalorder %s34, %s50
      %p52 = scmp.eq.s32.totalorder %s26, 0
      %p53 = por %p51, %p52
      %s54 = ssub.s32 %s20, %s27
      %p55 = scmp.eq.s32.totalorder %s54, 0
      %s57 = sadd.s32 %s56, 1
      %s58 = scalar_select %p55, %s56, %s57
      %p61 = pneg %p55
      %p62 = scmp.eq.s32.totalorder %s20, 1
      %p63 = por %p61, %p62
      %p64 = scmp.ne.s32.totalorder %s56, %s59
      %p65 = scmp.eq.s32.totalorder %s20, 0
      %p66 = por %p64, %p65
      %p67 = scmp.ne.s32.totalorder %s56, %s59
      %p68 = scmp.eq.s32.totalorder %s25, 1
      %p69 = por %p67, %p68
      %p70 = scmp.ne.s32.totalorder %s59, %s60
      %p71 = scmp.eq.s32.totalorder %s25, 0
      %p72 = por %p70, %p71
      %p73 = scmp.ne.s32.totalorder %s59, %s60
      %p74 = scmp.eq.s32.totalorder %s26, 1
      %p75 = por %p73, %p74
      %p77 = scmp.ne.s32.totalorder %s60, %s76
      %p78 = scmp.eq.s32.totalorder %s26, 0
      %p79 = por %p77, %p78
      %s80 = ssub.s32 %s20, %s27
      %p81 = scmp.eq.s32.totalorder %s80, 0
      %s83 = sadd.s32 %s82, 1
      %s84 = scalar_select %p81, %s82, %s83
      %p87 = pneg %p81
      %p88 = scmp.eq.s32.totalorder %s20, 1
      %p89 = por %p87, %p88
      %p90 = scmp.ne.s32.totalorder %s82, %s85
      %p91 = scmp.eq.s32.totalorder %s20, 0
      %p92 = por %p90, %p91
      %p93 = scmp.ne.s32.totalorder %s82, %s85
      %p94 = scmp.eq.s32.totalorder %s25, 1
      %p95 = por %p93, %p94
      %p96 = scmp.ne.s32.totalorder %s85, %s86
      %p97 = scmp.eq.s32.totalorder %s25, 0
      %p98 = por %p96, %p97
      %p99 = scmp.ne.s32.totalorder %s85, %s86
      %p100 = scmp.eq.s32.totalorder %s26, 1
      %p101 = por %p99, %p100
      %p103 = scmp.ne.s32.totalorder %s86, %s102
      %p104 = scmp.eq.s32.totalorder %s26, 0
      %p105 = por %p103, %p104
      %s106 = ssub.s32 %s20, %s27
      %p107 = scmp.eq.s32.totalorder %s106, 0
      %s109 = sadd.s32 %s108, 1
      %s110 = scalar_select %p107, %s108, %s109
      %p113 = pneg %p107
      %p114 = scmp.eq.s32.totalorder %s20, 1
      %p115 = por %p113, %p114
      %p116 = scmp.ne.s32.totalorder %s108, %s111
      %p117 = scmp.eq.s32.totalorder %s20, 0
      %p118 = por %p116, %p117
      %p119 = scmp.ne.s32.totalorder %s108, %s111
      %p120 = scmp.eq.s32.totalorder %s25, 1
      %p121 = por %p119, %p120
      %p122 = scmp.ne.s32.totalorder %s111, %s112
      %p123 = scmp.eq.s32.totalorder %s25, 0
      %p124 = por %p122, %p123
      %p125 = scmp.ne.s32.totalorder %s111, %s112
      %p126 = scmp.eq.s32.totalorder %s26, 1
      %p127 = por %p125, %p126
      %p129 = scmp.ne.s32.totalorder %s112, %s128
      %p130 = scmp.eq.s32.totalorder %s26, 0
      %p131 = por %p129, %p130
      %p132 = scmp.le.s32.totalorder 1, %s20
      %p133 = scmp.lt.s32.totalorder %s20, 3
      %p134 = pnand %p132, %p133
      %p135 = pneg %p134
      // Predicated region
      $region9: #{tpu_custom_call.1} parent=5 // pred_check
        _
      $region10: #{tpu_custom_call.1} parent=5 // pred_check_branch
        %137 = sbr.rel (%p134) target = $region12
      $region11: #{tpu_custom_call.1} parent=5 // pred_region
        %s138 = ssub.s32 %s20, 1
      $region12: #{tpu_custom_call.1} parent=5 // pred_fallthru
        _
      %p139 = scmp.lt.s32.totalorder %s20, 2
      // Predicated region
      $region13: #{tpu_custom_call.1} parent=5 // pred_check
        %p140 = pneg %p139
      $region14: #{tpu_custom_call.1} parent=5 // pred_check_branch
        %142 = sbr.rel (%p140) target = $region16
      $region15: #{tpu_custom_call.1} parent=5 // pred_region
        // Predicated region
        $region17: #{tpu_custom_call.1} parent=15 // pred_check
          %p143 = pneg %p40
        $region18: #{tpu_custom_call.1} parent=15 // pred_check_branch
          %145 = sbr.rel (%p143) target = $region20
        $region19: #{tpu_custom_call.1} parent=15 // pred_region
          %s146 = sand.u32 %s30, 1
          %s147 = scalar_lea.sflag [#allocation5], %s146
          %s148 = sand.u32 %s30, 1
          %s149 = smul.addr %s148, 32
          %s150 = scalar_lea.vmem [#allocation4], %s149
          %s151 = smul.u32 4, %s20
          %s153 = ssub.s32 512, 512
          %154 = vsyncadd %s147, %s153
          %s155 = smul.addr %s151, 2
          %s156 = smul.addr %s155, 64
          %s157 = scalar_lea.hbm %s1, %s156
          %s158 = sshll.u32 %s150, 4
          %s159 = int_to_ptr.vmem [resolvable:$true] %s158
          %164 = dma.hbm_to_vmem [thread:$0]  %s157, 512, %s159, %s147, 64, 64, 4
        $region20: #{tpu_custom_call.1} parent=15 // pred_fallthru
          _
        // Predicated region
        $region21: #{tpu_custom_call.1} parent=15 // pred_check
          %p165 = pneg %p66
        $region22: #{tpu_custom_call.1} parent=15 // pred_check_branch
          %167 = sbr.rel (%p165) target = $region24
        $region23: #{tpu_custom_call.1} parent=15 // pred_region
          %s168 = sand.u32 %s20, 1
          %s169 = scalar_lea.sflag [#allocation8], %s168
          %s170 = sand.u32 %s56, 1
          %s171 = smul.addr %s170, 128
          %s172 = scalar_lea.vmem [#allocation7], %s171
          %s173 = smul.u32 4, %s20
          %s175 = ssub.s32 2048, 2048
          %176 = vsyncadd %s169, %s175
          %s177 = smul.addr %s173, 8
          %s178 = smul.addr %s177, 64
          %s179 = scalar_lea.hbm %s2, %s178
          %s180 = sshll.u32 %s172, 4
          %s181 = int_to_ptr.vmem [resolvable:$true] %s180
          %186 = dma.hbm_to_vmem [thread:$0]  %s179, 2048, %s181, %s169, 64, 64, 4
        $region24: #{tpu_custom_call.1} parent=15 // pred_fallthru
          _
        // Predicated region
        $region25: #{tpu_custom_call.1} parent=15 // pred_check
          %p187 = pneg %p92
        $region26: #{tpu_custom_call.1} parent=15 // pred_check_branch
          %189 = sbr.rel (%p187) target = $region28
        $region27: #{tpu_custom_call.1} parent=15 // pred_region
          %s190 = sand.u32 %s20, 1
          %s191 = scalar_lea.sflag [#allocation8], %s190
          %s192 = sand.u32 %s82, 1
          %s193 = smul.addr %s192, 128
          %s194 = scalar_lea.vmem [#allocation9], %s193
          %s195 = smul.u32 4, %s20
          %s197 = ssub.s32 2048, 2048
          %198 = vsyncadd %s191, %s197
          %s199 = smul.addr %s195, 8
          %s200 = smul.addr %s199, 64
          %s201 = scalar_lea.hbm %s3, %s200
          %s202 = sshll.u32 %s194, 4
          %s203 = int_to_ptr.vmem [resolvable:$true] %s202
          %208 = dma.hbm_to_vmem [thread:$0]  %s201, 2048, %s203, %s191, 64, 64, 4
        $region28: #{tpu_custom_call.1} parent=15 // pred_fallthru
          _
      $region16: #{tpu_custom_call.1} parent=5 // pred_fallthru
        _
      %p209 = scmp.le.s32.totalorder 1, %s20
      %p210 = scmp.lt.s32.totalorder %s20, 3
      %p211 = pnand %p209, %p210
      %p212 = pneg %p211
      // Predicated region
      $region29: #{tpu_custom_call.1} parent=5 // pred_check
        _
      $region30: #{tpu_custom_call.1} parent=5 // pred_check_branch
        %214 = sbr.rel (%p211) target = $region32
      $region31: #{tpu_custom_call.1} parent=5 // pred_region
        %s215 = ssub.s32 %s20, 1
        %s216 = sand.u32 %s33, 1
        %s217 = scalar_lea.sflag [#allocation5], %s216
        %s218 = sand.u32 %s33, 1
        %s219 = smul.addr %s218, 32
        %s220 = scalar_lea.vmem [#allocation4], %s219
        // Predicated region
        $region33: #{tpu_custom_call.1} parent=31 // pred_check
          %p221 = pneg %p46
        $region34: #{tpu_custom_call.1} parent=31 // pred_check_branch
          %223 = sbr.rel (%p221) target = $region36
        $region35: #{tpu_custom_call.1} parent=31 // pred_region
          %224 = dma.done %s217, 512
        $region36: #{tpu_custom_call.1} parent=31 // pred_fallthru
          _
        %s225 = sand.u32 %s25, 1
        %s226 = scalar_lea.sflag [#allocation8], %s225
        %s227 = sand.u32 %s59, 1
        %s228 = smul.addr %s227, 128
        %s229 = scalar_lea.vmem [#allocation7], %s228
        // Predicated region
        $region37: #{tpu_custom_call.1} parent=31 // pred_check
          %p230 = pneg %p72
        $region38: #{tpu_custom_call.1} parent=31 // pred_check_branch
          %232 = sbr.rel (%p230) target = $region40
        $region39: #{tpu_custom_call.1} parent=31 // pred_region
          %233 = dma.done %s226, 2048
        $region40: #{tpu_custom_call.1} parent=31 // pred_fallthru
          _
        %s234 = sand.u32 %s25, 1
        %s235 = scalar_lea.sflag [#allocation8], %s234
        %s236 = sand.u32 %s85, 1
        %s237 = smul.addr %s236, 128
        %s238 = scalar_lea.vmem [#allocation9], %s237
        // Predicated region
        $region41: #{tpu_custom_call.1} parent=31 // pred_check
          %p239 = pneg %p98
        $region42: #{tpu_custom_call.1} parent=31 // pred_check_branch
          %241 = sbr.rel (%p239) target = $region44
        $region43: #{tpu_custom_call.1} parent=31 // pred_region
          %242 = dma.done %s235, 2048
        $region44: #{tpu_custom_call.1} parent=31 // pred_fallthru
          _
        %s243 = sand.u32 %s33, 1
        %s244 = scalar_lea.sflag [#allocation5], %s243
        %s245 = sand.u32 %s33, 1
        %s246 = smul.addr %s245, 32
        %s247 = scalar_lea.vmem [#allocation4], %s246
        %p248 = pneg %p46
        %p249 = pneg %p43
        %s250 = sand.u32 %s25, 1
        %s251 = scalar_lea.sflag [#allocation8], %s250
        %s252 = sand.u32 %s59, 1
        %s253 = smul.addr %s252, 128
        %s254 = scalar_lea.vmem [#allocation7], %s253
        %p255 = pneg %p72
        %p256 = pneg %p69
        %s257 = sand.u32 %s25, 1
        %s258 = scalar_lea.sflag [#allocation8], %s257
        %s259 = sand.u32 %s85, 1
        %s260 = smul.addr %s259, 128
        %s261 = scalar_lea.vmem [#allocation9], %s260
        %p262 = pneg %p98
        %p263 = pneg %p95
        %p264 = pneg %p124
        %p265 = pneg %p121
        %s266 = sand.u32 %s111, 1
        %s267 = scalar_lea.sflag [#allocation6], %s266
        %s268 = sand.u32 %s111, 1
        %s269 = smul.addr %s268, 64
        %s270 = scalar_lea.vmem [#allocation10], %s269
        %s271 = smul.u32 4, %s25
        %s272 = smul.u32 4, %s25
        %s273 = smul.u32 4, %s25
        %s274 = smul.u32 4, %s25
        %v277 = vld [vmem:[%s220] sm:$0xf]
        %v278 = vld [vmem:[%s220 + $0x4] sm:$0xf]
        %v279 = vld [vmem:[%s220 + $0x8] sm:$0xf]
        %v280 = vld [vmem:[%s220 + $0xc] sm:$0xf]
        %v281 = vld [vmem:[%s220 + $0x10] sm:$0xf]
        %v282 = vld [vmem:[%s220 + $0x14] sm:$0xf]
        %v283 = vld [vmem:[%s220 + $0x18] sm:$0xf]
        %v284 = vld [vmem:[%s220 + $0x1c] sm:$0xf]
        %v285 = vmul.bf16 %v277, 1090535680
        %v286 = vmul.bf16 %v278, 1090535680
        %v287 = vmul.bf16 %v279, 1090535680
        %v288 = vmul.bf16 %v280, 1090535680
        %v289 = vmul.bf16 %v281, 1090535680
        %v290 = vmul.bf16 %v282, 1090535680
        %v291 = vmul.bf16 %v283, 1090535680
        %v292 = vmul.bf16 %v284, 1090535680
        %v293 = vld [vmem:[%s229] sm:$0xf]
        %v294 = vld [vmem:[%s229 + $0x4] sm:$0xf]
        %v295 = vld [vmem:[%s229 + $0x8] sm:$0xf]
        %v296 = vld [vmem:[%s229 + $0xc] sm:$0xf]
        %v297 = vld [vmem:[%s229 + $0x10] sm:$0xf]
        %v298 = vld [vmem:[%s229 + $0x14] sm:$0xf]
        %v299 = vld [vmem:[%s229 + $0x18] sm:$0xf]
        %v300 = vld [vmem:[%s229 + $0x1c] sm:$0xf]
        %v301 = vld [vmem:[%s229 + $0x20] sm:$0xf]
        %v302 = vld [vmem:[%s229 + $0x24] sm:$0xf]
        %v303 = vld [vmem:[%s229 + $0x28] sm:$0xf]
        %v304 = vld [vmem:[%s229 + $0x2c] sm:$0xf]
        %v305 = vld [vmem:[%s229 + $0x30] sm:$0xf]
        %v306 = vld [vmem:[%s229 + $0x34] sm:$0xf]
        %v307 = vld [vmem:[%s229 + $0x38] sm:$0xf]
        %v308 = vld [vmem:[%s229 + $0x3c] sm:$0xf]
        %v309 = vld [vmem:[%s229 + $0x40] sm:$0xf]
        %v310 = vld [vmem:[%s229 + $0x44] sm:$0xf]
        %v311 = vld [vmem:[%s229 + $0x48] sm:$0xf]
        %v312 = vld [vmem:[%s229 + $0x4c] sm:$0xf]
        %v313 = vld [vmem:[%s229 + $0x50] sm:$0xf]
        %v314 = vld [vmem:[%s229 + $0x54] sm:$0xf]
        %v315 = vld [vmem:[%s229 + $0x58] sm:$0xf]
        %v316 = vld [vmem:[%s229 + $0x5c] sm:$0xf]
        %v317 = vld [vmem:[%s229 + $0x60] sm:$0xf]
        %v318 = vld [vmem:[%s229 + $0x64] sm:$0xf]
        %v319 = vld [vmem:[%s229 + $0x68] sm:$0xf]
        %v320 = vld [vmem:[%s229 + $0x6c] sm:$0xf]
        %v321 = vld [vmem:[%s229 + $0x70] sm:$0xf]
        %v322 = vld [vmem:[%s229 + $0x74] sm:$0xf]
        %v323 = vld [vmem:[%s229 + $0x78] sm:$0xf]
        %v324 = vld [vmem:[%s229 + $0x7c] sm:$0xf]
        %v327 = vunpack.c.l.b16 %v285
        %v328 = vunpack.c.l.b16 %v286
        %v329 = vpack.c.b16 %v328, %v327
        %v338 = vunpack.c.l.b16 %v293
        %v339 = vunpack.c.l.b16 %v294
        %v340 = vunpack.c.l.b16 %v295
        %v341 = vunpack.c.l.b16 %v296
        %v342 = vunpack.c.l.b16 %v297
        %v343 = vunpack.c.l.b16 %v298
        %v344 = vunpack.c.l.b16 %v299
        %v345 = vunpack.c.l.b16 %v300
        %v346 = vpack.c.b16 %v339, %v338
        %v347 = vpack.c.b16 %v341, %v340
        %v348 = vpack.c.b16 %v343, %v342
        %v349 = vpack.c.b16 %v345, %v344
        %vm350 = vcmask 523264
        %v352 = vsel %vm350, %v329, 0
        %v355 = vsel %vm350, %v346, 0
        %v358 = vsel %vm350, %v347, 0
        %v361 = vsel %vm350, %v348, 0
        %v364 = vsel %vm350, %v349, 0
        %366 = vmatprep.subr.bf16.mxu0 0
        %367 = vmatpush1.bf16.xpose.msra.mxu0 %v355
        %368 = vmatprep.subr.bf16.mxu0 0
        %369 = vmatpush1.bf16.xpose.msra.mxu0 %v358
        %370 = vmatprep.subr.bf16.mxu0 0
        %371 = vmatpush1.bf16.xpose.msra.mxu0 %v361
        %372 = vmatprep.subr.bf16.mxu0 0
        %373 = vmatpush1.bf16.xpose.msra.mxu0 %v364
        %374 = vmatprep.subr.bf16.mxu0 0
        %375 = vmatpush1.bf16.xpose.msra.mxu0 0
        %376 = vmatprep.subr.bf16.mxu0 0
        %377 = vmatpush1.bf16.xpose.msra.mxu0 0
        %378 = vmatprep.subr.bf16.mxu0 0
        %379 = vmatpush1.bf16.xpose.msra.mxu0 0
        %380 = vmatprep.subr.bf16.mxu0 0
        %381 = vmatpush1.bf16.xpose.msra.mxu0 0
        %382 = vmatprep.subr.bf16.mxu0 0
        %383 = vmatpush1.bf16.xpose.msra.mxu0 0
        %384 = vmatprep.subr.bf16.mxu0 0
        %385 = vmatpush1.bf16.xpose.msra.mxu0 0
        %386 = vmatprep.subr.bf16.mxu0 0
        %387 = vmatpush1.bf16.xpose.msra.mxu0 0
        %388 = vmatprep.subr.bf16.mxu0 0
        %389 = vmatpush1.bf16.xpose.msra.mxu0 0
        %390 = vmatprep.subr.bf16.mxu0 0
        %391 = vmatpush1.bf16.xpose.msra.mxu0 0
        %392 = vmatprep.subr.bf16.mxu0 0
        %393 = vmatpush1.bf16.xpose.msra.mxu0 0
        %394 = vmatprep.subr.bf16.mxu0 0
        %395 = vmatpush1.bf16.xpose.msra.mxu0 0
        %396 = vmatprep.subr.bf16.mxu0 0
        %397 = vmatpush1.bf16.xpose.msra.mxu0 0
        %398 = vmatprep.mubr.bf16.mxu0 0
        %399 = vmatmul.mubr.bf16.gmra.mrb[0].mxu0 %v352
        %v400 = vpop.f32.mrb[0].mxu0
        %v401 = vadd.f32 0.0, %v400
        %v402 = vpop.f32.mrb[0].mxu0
        %v403 = vpop.f32.mrb[0].mxu0
        %v404 = vadd.f32 0.0, %v403
        %v405 = vpop.f32.mrb[0].mxu0
        %406 = vdwg.mxu0
        %v409 = vunpack.c.l.b16 %v287
        %v410 = vunpack.c.l.b16 %v288
        %v411 = vpack.c.b16 %v410, %v409
        %v420 = vunpack.c.l.b16 %v301
        %v421 = vunpack.c.l.b16 %v302
        %v422 = vunpack.c.l.b16 %v303
        %v423 = vunpack.c.l.b16 %v304
        %v424 = vunpack.c.l.b16 %v305
        %v425 = vunpack.c.l.b16 %v306
        %v426 = vunpack.c.l.b16 %v307
        %v427 = vunpack.c.l.b16 %v308
        %v428 = vpack.c.b16 %v421, %v420
        %v429 = vpack.c.b16 %v423, %v422
        %v430 = vpack.c.b16 %v425, %v424
        %v431 = vpack.c.b16 %v427, %v426
        %v433 = vsel %vm350, %v411, 0
        %v436 = vsel %vm350, %v428, 0
        %v439 = vsel %vm350, %v429, 0
        %v442 = vsel %vm350, %v430, 0
        %v445 = vsel %vm350, %v431, 0
        %447 = vmatprep.subr.bf16.mxu0 0
        %448 = vmatpush1.bf16.xpose.msra.mxu0 %v436
        %449 = vmatprep.subr.bf16.mxu0 0
        %450 = vmatpush1.bf16.xpose.msra.mxu0 %v439
        %451 = vmatprep.subr.bf16.mxu0 0
        %452 = vmatpush1.bf16.xpose.msra.mxu0 %v442
        %453 = vmatprep.subr.bf16.mxu0 0
        %454 = vmatpush1.bf16.xpose.msra.mxu0 %v445
        %455 = vmatprep.subr.bf16.mxu0 0
        %456 = vmatpush1.bf16.xpose.msra.mxu0 0
        %457 = vmatprep.subr.bf16.mxu0 0
        %458 = vmatpush1.bf16.xpose.msra.mxu0 0
        %459 = vmatprep.subr.bf16.mxu0 0
        %460 = vmatpush1.bf16.xpose.msra.mxu0 0
        %461 = vmatprep.subr.bf16.mxu0 0
        %462 = vmatpush1.bf16.xpose.msra.mxu0 0
        %463 = vmatprep.subr.bf16.mxu0 0
        %464 = vmatpush1.bf16.xpose.msra.mxu0 0
        %465 = vmatprep.subr.bf16.mxu0 0
        %466 = vmatpush1.bf16.xpose.msra.mxu0 0
        %467 = vmatprep.subr.bf16.mxu0 0
        %468 = vmatpush1.bf16.xpose.msra.mxu0 0
        %469 = vmatprep.subr.bf16.mxu0 0
        %470 = vmatpush1.bf16.xpose.msra.mxu0 0
        %471 = vmatprep.subr.bf16.mxu0 0
        %472 = vmatpush1.bf16.xpose.msra.mxu0 0
        %473 = vmatprep.subr.bf16.mxu0 0
        %474 = vmatpush1.bf16.xpose.msra.mxu0 0
        %475 = vmatprep.subr.bf16.mxu0 0
        %476 = vmatpush1.bf16.xpose.msra.mxu0 0
        %477 = vmatprep.subr.bf16.mxu0 0
        %478 = vmatpush1.bf16.xpose.msra.mxu0 0
        %479 = vmatprep.mubr.bf16.mxu0 0
        %480 = vmatmul.mubr.bf16.gmra.mrb[0].mxu0 %v433
        %v481 = vpop.f32.mrb[0].mxu0
        %v482 = vadd.f32 0.0, %v481
        %v483 = vpop.f32.mrb[0].mxu0
        %v484 = vpop.f32.mrb[0].mxu0
        %v485 = vadd.f32 0.0, %v484
        %v486 = vpop.f32.mrb[0].mxu0
        %487 = vdwg.mxu0
        %v490 = vunpack.c.l.b16 %v289
        %v491 = vunpack.c.l.b16 %v290
        %v492 = vpack.c.b16 %v491, %v490
        %v501 = vunpack.c.l.b16 %v309
        %v502 = vunpack.c.l.b16 %v310
        %v503 = vunpack.c.l.b16 %v311
        %v504 = vunpack.c.l.b16 %v312
        %v505 = vunpack.c.l.b16 %v313
        %v506 = vunpack.c.l.b16 %v314
        %v507 = vunpack.c.l.b16 %v315
        %v508 = vunpack.c.l.b16 %v316
        %v509 = vpack.c.b16 %v502, %v501
        %v510 = vpack.c.b16 %v504, %v503
        %v511 = vpack.c.b16 %v506, %v505
        %v512 = vpack.c.b16 %v508, %v507
        %v514 = vsel %vm350, %v492, 0
        %v517 = vsel %vm350, %v509, 0
        %v520 = vsel %vm350, %v510, 0
        %v523 = vsel %vm350, %v511, 0
        %v526 = vsel %vm350, %v512, 0
        %528 = vmatprep.subr.bf16.mxu0 0
        %529 = vmatpush1.bf16.xpose.msra.mxu0 %v517
        %530 = vmatprep.subr.bf16.mxu0 0
        %531 = vmatpush1.bf16.xpose.msra.mxu0 %v520
        %532 = vmatprep.subr.bf16.mxu0 0
        %533 = vmatpush1.bf16.xpose.msra.mxu0 %v523
        %534 = vmatprep.subr.bf16.mxu0 0
        %535 = vmatpush1.bf16.xpose.msra.mxu0 %v526
        %536 = vmatprep.subr.bf16.mxu0 0
        %537 = vmatpush1.bf16.xpose.msra.mxu0 0
        %538 = vmatprep.subr.bf16.mxu0 0
        %539 = vmatpush1.bf16.xpose.msra.mxu0 0
        %540 = vmatprep.subr.bf16.mxu0 0
        %541 = vmatpush1.bf16.xpose.msra.mxu0 0
        %542 = vmatprep.subr.bf16.mxu0 0
        %543 = vmatpush1.bf16.xpose.msra.mxu0 0
        %544 = vmatprep.subr.bf16.mxu0 0
        %545 = vmatpush1.bf16.xpose.msra.mxu0 0
        %546 = vmatprep.subr.bf16.mxu0 0
        %547 = vmatpush1.bf16.xpose.msra.mxu0 0
        %548 = vmatprep.subr.bf16.mxu0 0
        %549 = vmatpush1.bf16.xpose.msra.mxu0 0
        %550 = vmatprep.subr.bf16.mxu0 0
        %551 = vmatpush1.bf16.xpose.msra.mxu0 0
        %552 = vmatprep.subr.bf16.mxu0 0
        %553 = vmatpush1.bf16.xpose.msra.mxu0 0
        %554 = vmatprep.subr.bf16.mxu0 0
        %555 = vmatpush1.bf16.xpose.msra.mxu0 0
        %556 = vmatprep.subr.bf16.mxu0 0
        %557 = vmatpush1.bf16.xpose.msra.mxu0 0
        %558 = vmatprep.subr.bf16.mxu0 0
        %559 = vmatpush1.bf16.xpose.msra.mxu0 0
        %560 = vmatprep.mubr.bf16.mxu0 0
        %561 = vmatmul.mubr.bf16.gmra.mrb[0].mxu0 %v514
        %v562 = vpop.f32.mrb[0].mxu0
        %v563 = vadd.f32 0.0, %v562
        %v564 = vpop.f32.mrb[0].mxu0
        %v565 = vpop.f32.mrb[0].mxu0
        %v566 = vadd.f32 0.0, %v565
        %v567 = vpop.f32.mrb[0].mxu0
        %568 = vdwg.mxu0
        %v571 = vunpack.c.l.b16 %v291
        %v572 = vunpack.c.l.b16 %v292
        %v573 = vpack.c.b16 %v572, %v571
        %v582 = vunpack.c.l.b16 %v317
        %v583 = vunpack.c.l.b16 %v318
        %v584 = vunpack.c.l.b16 %v319
        %v585 = vunpack.c.l.b16 %v320
        %v586 = vunpack.c.l.b16 %v321
        %v587 = vunpack.c.l.b16 %v322
        %v588 = vunpack.c.l.b16 %v323
        %v589 = vunpack.c.l.b16 %v324
        %v590 = vpack.c.b16 %v583, %v582
        %v591 = vpack.c.b16 %v585, %v584
        %v592 = vpack.c.b16 %v587, %v586
        %v593 = vpack.c.b16 %v589, %v588
        %v595 = vsel %vm350, %v573, 0
        %v598 = vsel %vm350, %v590, 0
        %v601 = vsel %vm350, %v591, 0
        %v604 = vsel %vm350, %v592, 0
        %v607 = vsel %vm350, %v593, 0
        %609 = vmatprep.subr.bf16.mxu0 0
        %610 = vmatpush1.bf16.xpose.msra.mxu0 %v598
        %611 = vmatprep.subr.bf16.mxu0 0
        %612 = vmatpush1.bf16.xpose.msra.mxu0 %v601
        %613 = vmatprep.subr.bf16.mxu0 0
        %614 = vmatpush1.bf16.xpose.msra.mxu0 %v604
        %615 = vmatprep.subr.bf16.mxu0 0
        %616 = vmatpush1.bf16.xpose.msra.mxu0 %v607
        %617 = vmatprep.subr.bf16.mxu0 0
        %618 = vmatpush1.bf16.xpose.msra.mxu0 0
        %619 = vmatprep.subr.bf16.mxu0 0
        %620 = vmatpush1.bf16.xpose.msra.mxu0 0
        %621 = vmatprep.subr.bf16.mxu0 0
        %622 = vmatpush1.bf16.xpose.msra.mxu0 0
        %623 = vmatprep.subr.bf16.mxu0 0
        %624 = vmatpush1.bf16.xpose.msra.mxu0 0
        %625 = vmatprep.subr.bf16.mxu0 0
        %626 = vmatpush1.bf16.xpose.msra.mxu0 0
        %627 = vmatprep.subr.bf16.mxu0 0
        %628 = vmatpush1.bf16.xpose.msra.mxu0 0
        %629 = vmatprep.subr.bf16.mxu0 0
        %630 = vmatpush1.bf16.xpose.msra.mxu0 0
        %631 = vmatprep.subr.bf16.mxu0 0
        %632 = vmatpush1.bf16.xpose.msra.mxu0 0
        %633 = vmatprep.subr.bf16.mxu0 0
        %634 = vmatpush1.bf16.xpose.msra.mxu0 0
        %635 = vmatprep.subr.bf16.mxu0 0
        %636 = vmatpush1.bf16.xpose.msra.mxu0 0
        %637 = vmatprep.subr.bf16.mxu0 0
        %638 = vmatpush1.bf16.xpose.msra.mxu0 0
        %639 = vmatprep.subr.bf16.mxu0 0
        %640 = vmatpush1.bf16.xpose.msra.mxu0 0
        %641 = vmatprep.mubr.bf16.mxu0 0
        %642 = vmatmul.mubr.bf16.gmra.mrb[0].mxu0 %v595
        %v643 = vpop.f32.mrb[0].mxu0
        %v644 = vadd.f32 0.0, %v643
        %v645 = vpop.f32.mrb[0].mxu0
        %v646 = vpop.f32.mrb[0].mxu0
        %v647 = vadd.f32 0.0, %v646
        %v648 = vpop.f32.mrb[0].mxu0
        %649 = vdwg.mxu0
        %v650 = vsel %vm350, %v401, -inf
        %651 = vmax.xlane.f32.xlu0 %v650
        %v652 = vpop.xlane.xlu0 %651
        %v653 = vsel %vm350, %v404, -inf
        %654 = vmax.xlane.f32.xlu0 %v653
        %v655 = vpop.xlane.xlu0 %654
        %v656 = vsel %vm350, %v482, -inf
        %657 = vmax.xlane.f32.xlu0 %v656
        %v658 = vpop.xlane.xlu0 %657
        %v659 = vsel %vm350, %v485, -inf
        %660 = vmax.xlane.f32.xlu0 %v659
        %v661 = vpop.xlane.xlu0 %660
        %v662 = vsel %vm350, %v563, -inf
        %663 = vmax.xlane.f32.xlu0 %v662
        %v664 = vpop.xlane.xlu0 %663
        %v665 = vsel %vm350, %v566, -inf
        %666 = vmax.xlane.f32.xlu0 %v665
        %v667 = vpop.xlane.xlu0 %666
        %v668 = vsel %vm350, %v644, -inf
        %669 = vmax.xlane.f32.xlu0 %v668
        %v670 = vpop.xlane.xlu0 %669
        %v671 = vsel %vm350, %v647, -inf
        %672 = vmax.xlane.f32.xlu0 %v671
        %v673 = vpop.xlane.xlu0 %672
        %v674 = vsub.f32 %v401, %v652
        %v675 = vsub.f32 %v404, %v655
        %v676 = vsub.f32 %v482, %v658
        %v677 = vsub.f32 %v485, %v661
        %v678 = vsub.f32 %v563, %v664
        %v679 = vsub.f32 %v566, %v667
        %v680 = vsub.f32 %v644, %v670
        %v681 = vsub.f32 %v647, %v673
        %v682 = vmul.f32 %v674, 1.442695
        %v683 = vpow.pop %v682
        %v684 = vmul.f32 %v675, 1.442695
        %v685 = vpow.pop %v684
        %v686 = vmul.f32 %v676, 1.442695
        %v687 = vpow.pop %v686
        %v688 = vmul.f32 %v677, 1.442695
        %v689 = vpow.pop %v688
        %v690 = vmul.f32 %v678, 1.442695
        %v691 = vpow.pop %v690
        %v692 = vmul.f32 %v679, 1.442695
        %v693 = vpow.pop %v692
        %v694 = vmul.f32 %v680, 1.442695
        %v695 = vpow.pop %v694
        %v696 = vmul.f32 %v681, 1.442695
        %v697 = vpow.pop %v696
        %v698 = vsel %vm350, %v683, 0.0
        %699 = vadd.xlane.f32.xlu0 %v698
        %v700 = vpop.xlane.xlu0 %699
        %v701 = vsel %vm350, %v685, 0.0
        %702 = vadd.xlane.f32.xlu0 %v701
        %v703 = vpop.xlane.xlu0 %702
        %v704 = vsel %vm350, %v687, 0.0
        %705 = vadd.xlane.f32.xlu0 %v704
        %v706 = vpop.xlane.xlu0 %705
        %v707 = vsel %vm350, %v689, 0.0
        %708 = vadd.xlane.f32.xlu0 %v707
        %v709 = vpop.xlane.xlu0 %708
        %v710 = vsel %vm350, %v691, 0.0
        %711 = vadd.xlane.f32.xlu0 %v710
        %v712 = vpop.xlane.xlu0 %711
        %v713 = vsel %vm350, %v693, 0.0
        %714 = vadd.xlane.f32.xlu0 %v713
        %v715 = vpop.xlane.xlu0 %714
        %v716 = vsel %vm350, %v695, 0.0
        %717 = vadd.xlane.f32.xlu0 %v716
        %v718 = vpop.xlane.xlu0 %717
        %v719 = vsel %vm350, %v697, 0.0
        %720 = vadd.xlane.f32.xlu0 %v719
        %v721 = vpop.xlane.xlu0 %720
        %v722 = vrcp.pop %v700
        %v723 = vrcp.pop %v703
        %v724 = vrcp.pop %v706
        %v725 = vrcp.pop %v709
        %v726 = vrcp.pop %v712
        %v727 = vrcp.pop %v715
        %v728 = vrcp.pop %v718
        %v729 = vrcp.pop %v721
        %v730 = vmul.f32 %v683, %v722
        %v731 = vmul.f32 %v685, %v723
        %v732 = vmul.f32 %v687, %v724
        %v733 = vmul.f32 %v689, %v725
        %v734 = vmul.f32 %v691, %v726
        %v735 = vmul.f32 %v693, %v727
        %v736 = vmul.f32 %v695, %v728
        %v737 = vmul.f32 %v697, %v729
        %v738 = vpack.c.bf16 %v731, %v730
        %v739 = vpack.c.bf16 %v733, %v732
        %v740 = vpack.c.bf16 %v735, %v734
        %v741 = vpack.c.bf16 %v737, %v736
        %v742 = vld [vmem:[%s238] sm:$0xf]
        %v743 = vld [vmem:[%s238 + $0x4] sm:$0xf]
        %v744 = vld [vmem:[%s238 + $0x8] sm:$0xf]
        %v745 = vld [vmem:[%s238 + $0xc] sm:$0xf]
        %v746 = vld [vmem:[%s238 + $0x10] sm:$0xf]
        %v747 = vld [vmem:[%s238 + $0x14] sm:$0xf]
        %v748 = vld [vmem:[%s238 + $0x18] sm:$0xf]
        %v749 = vld [vmem:[%s238 + $0x1c] sm:$0xf]
        %v750 = vld [vmem:[%s238 + $0x20] sm:$0xf]
        %v751 = vld [vmem:[%s238 + $0x24] sm:$0xf]
        %v752 = vld [vmem:[%s238 + $0x28] sm:$0xf]
        %v753 = vld [vmem:[%s238 + $0x2c] sm:$0xf]
        %v754 = vld [vmem:[%s238 + $0x30] sm:$0xf]
        %v755 = vld [vmem:[%s238 + $0x34] sm:$0xf]
        %v756 = vld [vmem:[%s238 + $0x38] sm:$0xf]
        %v757 = vld [vmem:[%s238 + $0x3c] sm:$0xf]
        %v758 = vld [vmem:[%s238 + $0x40] sm:$0xf]
        %v759 = vld [vmem:[%s238 + $0x44] sm:$0xf]
        %v760 = vld [vmem:[%s238 + $0x48] sm:$0xf]
        %v761 = vld [vmem:[%s238 + $0x4c] sm:$0xf]
        %v762 = vld [vmem:[%s238 + $0x50] sm:$0xf]
        %v763 = vld [vmem:[%s238 + $0x54] sm:$0xf]
        %v764 = vld [vmem:[%s238 + $0x58] sm:$0xf]
        %v765 = vld [vmem:[%s238 + $0x5c] sm:$0xf]
        %v766 = vld [vmem:[%s238 + $0x60] sm:$0xf]
        %v767 = vld [vmem:[%s238 + $0x64] sm:$0xf]
        %v768 = vld [vmem:[%s238 + $0x68] sm:$0xf]
        %v769 = vld [vmem:[%s238 + $0x6c] sm:$0xf]
        %v770 = vld [vmem:[%s238 + $0x70] sm:$0xf]
        %v771 = vld [vmem:[%s238 + $0x74] sm:$0xf]
        %v772 = vld [vmem:[%s238 + $0x78] sm:$0xf]
        %v773 = vld [vmem:[%s238 + $0x7c] sm:$0xf]
        %v782 = vunpack.c.l.b16 %v742
        %v783 = vunpack.c.l.b16 %v743
        %v784 = vunpack.c.l.b16 %v744
        %v785 = vunpack.c.l.b16 %v745
        %v786 = vunpack.c.l.b16 %v746
        %v787 = vunpack.c.l.b16 %v747
        %v788 = vunpack.c.l.b16 %v748
        %v789 = vunpack.c.l.b16 %v749
        %v790 = vpack.c.b16 %v783, %v782
        %v791 = vpack.c.b16 %v785, %v784
        %v792 = vpack.c.b16 %v787, %v786
        %v793 = vpack.c.b16 %v789, %v788
        %v799 = vsel %vm350, %v738, 0
        %801 = vmatprep.subr.bf16.mxu0 0
        %802 = vmatpush1.bf16.msra.mxu0 %v790
        %803 = vmatprep.subr.bf16.mxu0 0
        %804 = vmatpush1.bf16.msra.mxu0 %v791
        %805 = vmatprep.subr.bf16.mxu0 0
        %806 = vmatpush1.bf16.msra.mxu0 %v792
        %807 = vmatprep.subr.bf16.mxu0 0
        %808 = vmatpush1.bf16.msra.mxu0 %v793
        %809 = vmatprep.subr.bf16.mxu0 0
        %810 = vmatpush1.bf16.msra.mxu0 0
        %811 = vmatprep.subr.bf16.mxu0 0
        %812 = vmatpush1.bf16.msra.mxu0 0
        %813 = vmatprep.subr.bf16.mxu0 0
        %814 = vmatpush1.bf16.msra.mxu0 0
        %815 = vmatprep.subr.bf16.mxu0 0
        %816 = vmatpush1.bf16.msra.mxu0 0
        %817 = vmatprep.subr.bf16.mxu0 0
        %818 = vmatpush1.bf16.msra.mxu0 0
        %819 = vmatprep.subr.bf16.mxu0 0
        %820 = vmatpush1.bf16.msra.mxu0 0
        %821 = vmatprep.subr.bf16.mxu0 0
        %822 = vmatpush1.bf16.msra.mxu0 0
        %823 = vmatprep.subr.bf16.mxu0 0
        %824 = vmatpush1.bf16.msra.mxu0 0
        %825 = vmatprep.subr.bf16.mxu0 0
        %826 = vmatpush1.bf16.msra.mxu0 0
        %827 = vmatprep.subr.bf16.mxu0 0
        %828 = vmatpush1.bf16.msra.mxu0 0
        %829 = vmatprep.subr.bf16.mxu0 0
        %830 = vmatpush1.bf16.msra.mxu0 0
        %831 = vmatprep.subr.bf16.mxu0 0
        %832 = vmatpush1.bf16.msra.mxu0 0
        %833 = vmatprep.mubr.bf16.mxu0 0
        %834 = vmatmul.mubr.bf16.gmra.mrb[0].mxu0 %v799
        %v835 = vpop.f32.mrb[0].mxu0
        %v836 = vadd.f32 0.0, %v835
        %v837 = vpop.f32.mrb[0].mxu0
        %v838 = vpop.f32.mrb[0].mxu0
        %v839 = vadd.f32 0.0, %v838
        %v840 = vpop.f32.mrb[0].mxu0
        %841 = vdwg.mxu0
        %v850 = vunpack.c.l.b16 %v750
        %v851 = vunpack.c.l.b16 %v751
        %v852 = vunpack.c.l.b16 %v752
        %v853 = vunpack.c.l.b16 %v753
        %v854 = vunpack.c.l.b16 %v754
        %v855 = vunpack.c.l.b16 %v755
        %v856 = vunpack.c.l.b16 %v756
        %v857 = vunpack.c.l.b16 %v757
        %v858 = vpack.c.b16 %v851, %v850
        %v859 = vpack.c.b16 %v853, %v852
        %v860 = vpack.c.b16 %v855, %v854
        %v861 = vpack.c.b16 %v857, %v856
        %v867 = vsel %vm350, %v739, 0
        %869 = vmatprep.subr.bf16.mxu0 0
        %870 = vmatpush1.bf16.msra.mxu0 %v858
        %871 = vmatprep.subr.bf16.mxu0 0
        %872 = vmatpush1.bf16.msra.mxu0 %v859
        %873 = vmatprep.subr.bf16.mxu0 0
        %874 = vmatpush1.bf16.msra.mxu0 %v860
        %875 = vmatprep.subr.bf16.mxu0 0
        %876 = vmatpush1.bf16.msra.mxu0 %v861
        %877 = vmatprep.subr.bf16.mxu0 0
        %878 = vmatpush1.bf16.msra.mxu0 0
        %879 = vmatprep.subr.bf16.mxu0 0
        %880 = vmatpush1.bf16.msra.mxu0 0
        %881 = vmatprep.subr.bf16.mxu0 0
        %882 = vmatpush1.bf16.msra.mxu0 0
        %883 = vmatprep.subr.bf16.mxu0 0
        %884 = vmatpush1.bf16.msra.mxu0 0
        %885 = vmatprep.subr.bf16.mxu0 0
        %886 = vmatpush1.bf16.msra.mxu0 0
        %887 = vmatprep.subr.bf16.mxu0 0
        %888 = vmatpush1.bf16.msra.mxu0 0
        %889 = vmatprep.subr.bf16.mxu0 0
        %890 = vmatpush1.bf16.msra.mxu0 0
        %891 = vmatprep.subr.bf16.mxu0 0
        %892 = vmatpush1.bf16.msra.mxu0 0
        %893 = vmatprep.subr.bf16.mxu0 0
        %894 = vmatpush1.bf16.msra.mxu0 0
        %895 = vmatprep.subr.bf16.mxu0 0
        %896 = vmatpush1.bf16.msra.mxu0 0
        %897 = vmatprep.subr.bf16.mxu0 0
        %898 = vmatpush1.bf16.msra.mxu0 0
        %899 = vmatprep.subr.bf16.mxu0 0
        %900 = vmatpush1.bf16.msra.mxu0 0
        %901 = vmatprep.mubr.bf16.mxu0 0
        %902 = vmatmul.mubr.bf16.gmra.mrb[0].mxu0 %v867
        %v903 = vpop.f32.mrb[0].mxu0
        %v904 = vadd.f32 0.0, %v903
        %v905 = vpop.f32.mrb[0].mxu0
        %v906 = vpop.f32.mrb[0].mxu0
        %v907 = vadd.f32 0.0, %v906
        %v908 = vpop.f32.mrb[0].mxu0
        %909 = vdwg.mxu0
        %v918 = vunpack.c.l.b16 %v758
        %v919 = vunpack.c.l.b16 %v759
        %v920 = vunpack.c.l.b16 %v760
        %v921 = vunpack.c.l.b16 %v761
        %v922 = vunpack.c.l.b16 %v762
        %v923 = vunpack.c.l.b16 %v763
        %v924 = vunpack.c.l.b16 %v764
        %v925 = vunpack.c.l.b16 %v765
        %v926 = vpack.c.b16 %v919, %v918
        %v927 = vpack.c.b16 %v921, %v920
        %v928 = vpack.c.b16 %v923, %v922
        %v929 = vpack.c.b16 %v925, %v924
        %v935 = vsel %vm350, %v740, 0
        %937 = vmatprep.subr.bf16.mxu0 0
        %938 = vmatpush1.bf16.msra.mxu0 %v926
        %939 = vmatprep.subr.bf16.mxu0 0
        %940 = vmatpush1.bf16.msra.mxu0 %v927
        %941 = vmatprep.subr.bf16.mxu0 0
        %942 = vmatpush1.bf16.msra.mxu0 %v928
        %943 = vmatprep.subr.bf16.mxu0 0
        %944 = vmatpush1.bf16.msra.mxu0 %v929
        %945 = vmatprep.subr.bf16.mxu0 0
        %946 = vmatpush1.bf16.msra.mxu0 0
        %947 = vmatprep.subr.bf16.mxu0 0
        %948 = vmatpush1.bf16.msra.mxu0 0
        %949 = vmatprep.subr.bf16.mxu0 0
        %950 = vmatpush1.bf16.msra.mxu0 0
        %951 = vmatprep.subr.bf16.mxu0 0
        %952 = vmatpush1.bf16.msra.mxu0 0
        %953 = vmatprep.subr.bf16.mxu0 0
        %954 = vmatpush1.bf16.msra.mxu0 0
        %955 = vmatprep.subr.bf16.mxu0 0
        %956 = vmatpush1.bf16.msra.mxu0 0
        %957 = vmatprep.subr.bf16.mxu0 0
        %958 = vmatpush1.bf16.msra.mxu0 0
        %959 = vmatprep.subr.bf16.mxu0 0
        %960 = vmatpush1.bf16.msra.mxu0 0
        %961 = vmatprep.subr.bf16.mxu0 0
        %962 = vmatpush1.bf16.msra.mxu0 0
        %963 = vmatprep.subr.bf16.mxu0 0
        %964 = vmatpush1.bf16.msra.mxu0 0
        %965 = vmatprep.subr.bf16.mxu0 0
        %966 = vmatpush1.bf16.msra.mxu0 0
        %967 = vmatprep.subr.bf16.mxu0 0
        %968 = vmatpush1.bf16.msra.mxu0 0
        %969 = vmatprep.mubr.bf16.mxu0 0
        %970 = vmatmul.mubr.bf16.gmra.mrb[0].mxu0 %v935
        %v971 = vpop.f32.mrb[0].mxu0
        %v972 = vadd.f32 0.0, %v971
        %v973 = vpop.f32.mrb[0].mxu0
        %v974 = vpop.f32.mrb[0].mxu0
        %v975 = vadd.f32 0.0, %v974
        %v976 = vpop.f32.mrb[0].mxu0
        %977 = vdwg.mxu0
        %v986 = vunpack.c.l.b16 %v766
        %v987 = vunpack.c.l.b16 %v767
        %v988 = vunpack.c.l.b16 %v768
        %v989 = vunpack.c.l.b16 %v769
        %v990 = vunpack.c.l.b16 %v770
        %v991 = vunpack.c.l.b16 %v771
        %v992 = vunpack.c.l.b16 %v772
        %v993 = vunpack.c.l.b16 %v773
        %v994 = vpack.c.b16 %v987, %v986
        %v995 = vpack.c.b16 %v989, %v988
        %v996 = vpack.c.b16 %v991, %v990
        %v997 = vpack.c.b16 %v993, %v992
        %v1003 = vsel %vm350, %v741, 0
        %1005 = vmatprep.subr.bf16.mxu0 0
        %1006 = vmatpush1.bf16.msra.mxu0 %v994
        %1007 = vmatprep.subr.bf16.mxu0 0
        %1008 = vmatpush1.bf16.msra.mxu0 %v995
        %1009 = vmatprep.subr.bf16.mxu0 0
        %1010 = vmatpush1.bf16.msra.mxu0 %v996
        %1011 = vmatprep.subr.bf16.mxu0 0
        %1012 = vmatpush1.bf16.msra.mxu0 %v997
        %1013 = vmatprep.subr.bf16.mxu0 0
        %1014 = vmatpush1.bf16.msra.mxu0 0
        %1015 = vmatprep.subr.bf16.mxu0 0
        %1016 = vmatpush1.bf16.msra.mxu0 0
        %1017 = vmatprep.subr.bf16.mxu0 0
        %1018 = vmatpush1.bf16.msra.mxu0 0
        %1019 = vmatprep.subr.bf16.mxu0 0
        %1020 = vmatpush1.bf16.msra.mxu0 0
        %1021 = vmatprep.subr.bf16.mxu0 0
        %1022 = vmatpush1.bf16.msra.mxu0 0
        %1023 = vmatprep.subr.bf16.mxu0 0
        %1024 = vmatpush1.bf16.msra.mxu0 0
        %1025 = vmatprep.subr.bf16.mxu0 0
        %1026 = vmatpush1.bf16.msra.mxu0 0
        %1027 = vmatprep.subr.bf16.mxu0 0
        %1028 = vmatpush1.bf16.msra.mxu0 0
        %1029 = vmatprep.subr.bf16.mxu0 0
        %1030 = vmatpush1.bf16.msra.mxu0 0
        %1031 = vmatprep.subr.bf16.mxu0 0
        %1032 = vmatpush1.bf16.msra.mxu0 0
        %1033 = vmatprep.subr.bf16.mxu0 0
        %1034 = vmatpush1.bf16.msra.mxu0 0
        %1035 = vmatprep.subr.bf16.mxu0 0
        %1036 = vmatpush1.bf16.msra.mxu0 0
        %1037 = vmatprep.mubr.bf16.mxu0 0
        %1038 = vmatmul.mubr.bf16.gmra.mrb[0].mxu0 %v1003
        %v1039 = vpop.f32.mrb[0].mxu0
        %v1040 = vadd.f32 0.0, %v1039
        %v1041 = vpop.f32.mrb[0].mxu0
        %v1042 = vpop.f32.mrb[0].mxu0
        %v1043 = vadd.f32 0.0, %v1042
        %v1044 = vpop.f32.mrb[0].mxu0
        %1045 = vdwg.mxu0
        %1046 = vst.msk [vmem:[%s270] sm:$0xff] %vm350, %v836
        %1047 = vst.msk [vmem:[%s270 + $0x8] sm:$0xff] %vm350, %v839
        %1048 = vst.msk [vmem:[%s270 + $0x10] sm:$0xff] %vm350, %v904
        %1049 = vst.msk [vmem:[%s270 + $0x18] sm:$0xff] %vm350, %v907
        %1050 = vst.msk [vmem:[%s270 + $0x20] sm:$0xff] %vm350, %v972
        %1051 = vst.msk [vmem:[%s270 + $0x28] sm:$0xff] %vm350, %v975
        %1052 = vst.msk [vmem:[%s270 + $0x30] sm:$0xff] %vm350, %v1040
        %1053 = vst.msk [vmem:[%s270 + $0x38] sm:$0xff] %vm350, %v1043
        %s1054 = sand.u32 %s111, 1
        %s1055 = scalar_lea.sflag [#allocation6], %s1054
        %s1056 = sand.u32 %s111, 1
        %s1057 = smul.addr %s1056, 64
        %s1058 = scalar_lea.vmem [#allocation10], %s1057
        // Predicated region
        $region45: #{tpu_custom_call.1} parent=31 // pred_check
          %p1059 = pneg %p121
        $region46: #{tpu_custom_call.1} parent=31 // pred_check_branch
          %1061 = sbr.rel (%p1059) target = $region48
        $region47: #{tpu_custom_call.1} parent=31 // pred_region
          %s1062 = smul.u32 4, %s25
          %s1064 = ssub.s32 1024, 1024
          %1065 = vsyncadd %s1055, %s1064
          %s1066 = smul.addr %s1062, 2
          %s1067 = smul.addr %s1066, 128
          %s1068 = scalar_lea.hbm %s4, %s1067
          %s1069 = sshll.u32 %s1058, 4
          %s1070 = int_to_ptr.vmem [resolvable:$true] %s1069
          %1075 = dma.vmem_to_hbm [thread:$0]  %s1070, 1024, %s1068, %s1055, 128, 128, 8
        $region48: #{tpu_custom_call.1} parent=31 // pred_fallthru
          _
      $region32: #{tpu_custom_call.1} parent=5 // pred_fallthru
        _
      %p1076 = scmp.le.s32.totalorder 2, %s20
      // Predicated region
      $region49: #{tpu_custom_call.1} parent=5 // pred_check
        %p1077 = pneg %p1076
      $region50: #{tpu_custom_call.1} parent=5 // pred_check_branch
        %1079 = sbr.rel (%p1077) target = $region52
      $region51: #{tpu_custom_call.1} parent=5 // pred_region
        %s1080 = ssub.s32 %s20, 2
        // Predicated region
        $region53: #{tpu_custom_call.1} parent=51 // pred_check
          %p1081 = pneg %p127
        $region54: #{tpu_custom_call.1} parent=51 // pred_check_branch
          %1083 = sbr.rel (%p1081) target = $region56
        $region55: #{tpu_custom_call.1} parent=51 // pred_region
          %s1084 = sand.u32 %s112, 1
          %s1085 = scalar_lea.sflag [#allocation6], %s1084
          %s1086 = sand.u32 %s112, 1
          %s1087 = smul.addr %s1086, 64
          %s1088 = scalar_lea.vmem [#allocation10], %s1087
          %1089 = dma.done %s1085, 1024
        $region56: #{tpu_custom_call.1} parent=51 // pred_fallthru
          _
      $region52: #{tpu_custom_call.1} parent=5 // pred_fallthru
        _
    $region6: #{tpu_custom_call.1} parent=1 // loop_footer
      %s24 = sadd.s32 1, %s20
    $region7: #{tpu_custom_call.1} parent=1 // loop_footer_branch
      %19 = sbr.rel target = $region3
    $region8: #{tpu_custom_call.1} parent=1 // loop_exit
      _
    %1090 = vsyncpa [#allocation5], 1
    %s1091 = scalar_lea.sflag [#allocation5], 1
    %1092 = vsyncpa %s1091, 1
    %1093 = vsyncpa [#allocation8], 1
    %s1094 = scalar_lea.sflag [#allocation8], 1
    %1095 = vsyncpa %s1094, 1
    %1096 = vsyncpa [#allocation6], 1
    %s1097 = scalar_lea.sflag [#allocation6], 1
    %1098 = vsyncpa %s1097, 1

</llo_original>
